<compile_context>
chip_gen: v7x
topology: tpu7x:2x2x1
jax: 0.10.0
libtpu: 0.0.40
codegen_flags: <defaults>
</compile_context>

<pallas_src>
import jax
import jax.numpy as jnp
from jax.experimental import pallas as pl
from jax.experimental.pallas import tpu as pltpu


def _round_up(v, m):
    return ((v + m - 1) // m) * m


def lstm_kernel(x_ref, wih_ref, whh_ref, b_ref, wfc_ref, bfc_ref,
                out_ref, xw_ref, h_ref, c_ref):
    B = h_ref.shape[0]              # batch-slab rows (multiple of 8)
    H = h_ref.shape[1]              # per-gate width, padded to a 128 multiple
    T = x_ref.shape[0] // B         # timesteps in this chunk
    t_blk = pl.program_id(1)

    # Input projections for every timestep of this chunk in ONE MXU matmul,
    # bias folded in.  Rows [t*B, (t+1)*B) of xw belong to local timestep t.
    xw_ref[...] = (jnp.dot(x_ref[...], wih_ref[...],
                           preferred_element_type=jnp.float32) + b_ref[...])

    whh = whh_ref[...]              # (H, 4H) bf16, resident across the loop

    def gate_math(gates, c):
        # gate order (i, f, o, g); every gate sits in its own 128-lane group,
        # so all slices below are lane-aligned vreg selects.
        sig = jax.nn.sigmoid(gates[:, :3 * H])
        i_g = sig[:, 0:H]
        f_g = sig[:, H:2 * H]
        o_g = sig[:, 2 * H:3 * H]
        g_g = jnp.tanh(gates[:, 3 * H:])
        c_new = f_g * c + i_g * g_g
        h_new = (o_g * jnp.tanh(c_new)).astype(jnp.bfloat16)   # bf16 carry
        return h_new, c_new

    def recur(h, c, row):
        gates = xw_ref[pl.ds(row, B), :] + jnp.dot(
            h, whh, preferred_element_type=jnp.float32)
        return gate_math(gates, c)

    # --- first timestep of this chunk ---------------------------------------
    @pl.when(t_blk == 0)
    def _():
        # Peeled t == 0: h0 == c0 == 0, so skip the h @ W_hh matmul entirely.
        h1, c1 = gate_math(xw_ref[pl.ds(0, B), :],
                           jnp.zeros((B, H), jnp.float32))
        h_ref[...] = h1
        c_ref[...] = c1

    @pl.when(t_blk != 0)
    def _():
        h1, c1 = recur(h_ref[...], c_ref[...], 0)
        h_ref[...] = h1
        c_ref[...] = c1

    # --- remaining timesteps of this chunk (static trip count, unrolled) ----
    def body(t, carry):
        h, c = carry
        row = pl.multiple_of(t * B, 8)
        return recur(h, c, row)

    h_last, c_last = jax.lax.fori_loop(1, T, body, (h_ref[...], c_ref[...]),
                                       unroll=True)
    h_ref[...] = h_last
    c_ref[...] = c_last

    # --- final Linear on the last timestep's hidden state -------------------
    @pl.when(t_blk == pl.num_programs(1) - 1)
    def _():
        out_ref[...] = (jnp.dot(h_last, wfc_ref[...],
                                preferred_element_type=jnp.float32)
                        + bfc_ref[...]).astype(out_ref.dtype)


def prepare_lstm_params(params):
    """One-time weight prep (reorder, pad, transpose, cast).  Hoisted out of
    the per-call path."""
    w_ih, w_hh = params["w_ih"], params["w_hh"]
    b_ih, b_hh = params["b_ih"], params["b_hh"]
    w_fc, b_fc = params["w_fc"], params["b_fc"]
    H = w_hh.shape[1]                       # w_hh: (4H, H)
    I = w_ih.shape[1]                       # w_ih: (4H, I)
    O = w_fc.shape[0]                       # w_fc: (O, H)
    H_pad = _round_up(H, 128)               # each gate -> its own 128-lane group
    O_pad = _round_up(O, 128)               # lane-dense FC output

    def reorder_pad(a):
        # PyTorch gate order (i, f, g, o) -> (i, f, o, g); pad each gate to H_pad.
        blocks = [a[0:H], a[H:2 * H], a[3 * H:4 * H], a[2 * H:3 * H]]
        pad_cfg = ((0, H_pad - H),) + ((0, 0),) * (a.ndim - 1)
        return jnp.concatenate([jnp.pad(b, pad_cfg) for b in blocks], axis=0)

    wih_t = reorder_pad(w_ih).T.astype(jnp.bfloat16)                # (I, 4*H_pad)
    whh_r = jnp.pad(reorder_pad(w_hh), ((0, 0), (0, H_pad - H)))    # (4*H_pad, H_pad)
    whh_t = whh_r.T.astype(jnp.bfloat16)                            # (H_pad, 4*H_pad)
    b_all = reorder_pad(b_ih + b_hh).reshape(1, 4 * H_pad).astype(jnp.float32)
    wfc_t = jnp.pad(w_fc.T, ((0, H_pad - H), (0, O_pad - O))).astype(jnp.bfloat16)
    bfc = jnp.pad(b_fc, (0, O_pad - O)).reshape(1, O_pad).astype(jnp.float32)
    return {"wih_t": wih_t, "whh_t": whh_t, "b_all": b_all,
            "wfc_t": wfc_t, "bfc": bfc, "sizes": (I, H, H_pad, O, O_pad)}


def lstm_model_forward(x, prepped, *, t_chunk=None):
    """x: (B, S, I) float32.  Returns (B, output_size) float32."""
    I, H, H_pad, O, O_pad = prepped["sizes"]
    B, S, I_x = x.shape
    assert I_x == I

    B_pad = _round_up(B, 8)
    # Split the batch across TensorCores (v7x) when each slab stays 8-aligned.
    n_bslabs = 2 if (B_pad >= 16 and B_pad % 16 == 0) else 1
    B_slab = B_pad // n_bslabs

    if t_chunk is None:
        t_chunk = max(d for d in range(1, S + 1) if S % d == 0 and d <= 32)
    assert S % t_chunk == 0
    n_tchunks = S // t_chunk

    # Time-major, batch-padded, grouped by batch slab, flattened lane-dense:
    # row ((slab*S + t) * B_slab + j) holds timestep t of batch row slab*B_slab+j.
    # TODO(synk): for large activations, store x time-major upstream to avoid
    # this extra HBM transpose pass in the wrapper.
    x_tm = jnp.transpose(x, (1, 0, 2))                               # (S, B, I)
    x_tm = jnp.pad(x_tm, ((0, 0), (0, B_pad - B), (0, 0)))           # (S, B_pad, I)
    x_sl = x_tm.reshape(S, n_bslabs, B_slab, I).transpose(1, 0, 2, 3)
    x2d = x_sl.reshape(n_bslabs * S * B_slab, I).astype(jnp.bfloat16)

    # Explicit VMEM budget (double-buffered inputs/output + scratch) + headroom.
    est = (2 * (t_chunk * B_slab * I * 2)
           + 2 * (I * 4 * H_pad * 2 + H_pad * 4 * H_pad * 2 + 4 * H_pad * 4
                  + H_pad * O_pad * 2 + O_pad * 4)
           + 2 * (B_slab * O_pad * 4)
           + t_chunk * B_slab * 4 * H_pad * 4
           + B_slab * H_pad * (2 + 4))
    vmem_limit = int(min(max(32 << 20, 2 * est + (8 << 20)), 64 << 20))

    out = pl.pallas_call(
        lstm_kernel,
        out_shape=jax.ShapeDtypeStruct((B_pad, O_pad), jnp.float32),
        grid_spec=pltpu.PrefetchScalarGridSpec(
            num_scalar_prefetch=0,
            grid=(n_bslabs, n_tchunks),
            in_specs=[
                # one (t_chunk, B_slab) slab of timesteps per grid step
                pl.BlockSpec((t_chunk * B_slab, I),
                             lambda b, t, n=n_tchunks: (b * n + t, 0)),
                pl.BlockSpec((I, 4 * H_pad), lambda b, t: (0, 0)),     # W_ih^T
                pl.BlockSpec((H_pad, 4 * H_pad), lambda b, t: (0, 0)), # W_hh^T
                pl.BlockSpec((1, 4 * H_pad), lambda b, t: (0, 0)),     # bias
                pl.BlockSpec((H_pad, O_pad), lambda b, t: (0, 0)),     # W_fc^T
                pl.BlockSpec((1, O_pad), lambda b, t: (0, 0)),         # b_fc
            ],
            out_specs=pl.BlockSpec((B_slab, O_pad), lambda b, t: (b, 0)),
            scratch_shapes=[
                pltpu.VMEM((t_chunk * B_slab, 4 * H_pad), jnp.float32),  # xw chunk
                pltpu.VMEM((B_slab, H_pad), jnp.bfloat16),               # h carry
                pltpu.VMEM((B_slab, H_pad), jnp.float32),                # c carry
            ],
        ),
        compiler_params=pltpu.CompilerParams(
            dimension_semantics=("parallel", "arbitrary"),
            vmem_limit_bytes=vmem_limit),
    )(x2d, prepped["wih_t"], prepped["whh_t"], prepped["b_all"],
      prepped["wfc_t"], prepped["bfc"])
    return out[:B, :O]


def lstm_model_reference(x, params):
    """Pure-JAX reference matching PyTorch LSTM + Linear semantics (f32)."""
    w_ih, w_hh, b_ih, b_hh, w_fc, b_fc = (
        params["w_ih"], params["w_hh"], params["b_ih"], params["b_hh"],
        params["w_fc"], params["b_fc"])
    B, S, I = x.shape
    H = w_hh.shape[1]
    h = jnp.zeros((B, H), jnp.float32)
    c = jnp.zeros((B, H), jnp.float32)

    def step(carry, x_t):
        h, c = carry
        gates = x_t @ w_ih.T + b_ih + h @ w_hh.T + b_hh
        i_g = jax.nn.sigmoid(gates[:, 0:H])
        f_g = jax.nn.sigmoid(gates[:, H:2 * H])
        g_g = jnp.tanh(gates[:, 2 * H:3 * H])
        o_g = jax.nn.sigmoid(gates[:, 3 * H:4 * H])
        c = f_g * c + i_g * g_g
        h = o_g * jnp.tanh(c)
        return (h, c), None

    (h, c), _ = jax.lax.scan(step, (h, c), jnp.swapaxes(x, 0, 1))
    return h @ w_fc.T + b_fc


if __name__ == "__main__":
    # Small, module-consistent shapes.  batch=16 exercises the 2-slab
    # (megacore) path; t_chunk=4 exercises the time-chunked carry path.
    batch, seq, input_size, hidden_size, output_size = 16, 8, 16, 32, 8

    key = jax.random.PRNGKey(0)
    keys = jax.random.split(key, 7)
    scale = 1.0 / jnp.sqrt(hidden_size)

    params = {
        "w_ih": jax.random.uniform(keys[0], (4 * hidden_size, input_size),
                                   jnp.float32, -scale, scale),
        "w_hh": jax.random.uniform(keys[1], (4 * hidden_size, hidden_size),
                                   jnp.float32, -scale, scale),
        "b_ih": jax.random.uniform(keys[2], (4 * hidden_size,),
                                   jnp.float32, -scale, scale),
        "b_hh": jax.random.uniform(keys[3], (4 * hidden_size,),
                                   jnp.float32, -scale, scale),
        "w_fc": jax.random.uniform(keys[4], (output_size, hidden_size),
                                   jnp.float32, -scale, scale),
        "b_fc": jax.random.uniform(keys[5], (output_size,),
                                   jnp.float32, -scale, scale),
    }

    x = jax.random.normal(keys[6], (batch, seq, input_size), jnp.float32)

    prepped = prepare_lstm_params(params)          # one-time weight prep
    out = lstm_model_forward(x, prepped, t_chunk=4)
    out = jax.block_until_ready(out)

    ref = jax.block_until_ready(lstm_model_reference(x, params))
    assert out.shape == (batch, output_size)
    # bf16 MXU operands with f32 accumulate -> looser tolerance than pure f32.
    assert jnp.allclose(out, ref, atol=2e-2, rtol=2e-2), "mismatch vs reference"

    print("KERNEL_OK")
</pallas_src>

<mosaic_0001>
module attributes {stable_mosaic.version = 11 : i64} {
  func.func @lstm_kernel(%arg0: i32, %arg1: i32, %arg2: memref<32x16xbf16, #tpu.memory_space<vmem>>, %arg3: memref<16x512xbf16, #tpu.memory_space<vmem>>, %arg4: memref<128x512xbf16, #tpu.memory_space<vmem>>, %arg5: memref<1x512xf32, #tpu.memory_space<vmem>>, %arg6: memref<128x128xbf16, #tpu.memory_space<vmem>>, %arg7: memref<1x128xf32, #tpu.memory_space<vmem>>, %arg8: memref<8x128xf32, #tpu.memory_space<vmem>>, %arg9: memref<32x512xf32, #tpu.memory_space<vmem>>, %arg10: memref<8x128xbf16, #tpu.memory_space<vmem>>, %arg11: memref<8x128xf32, #tpu.memory_space<vmem>>) attributes {dimension_semantics = [#tpu.dimension_semantics<parallel>, #tpu.dimension_semantics<arbitrary>], iteration_bounds = array<i64: 2, 2>, scalar_prefetch = 0 : i64, scratch_operands = 3 : i64, tpu.core_type = #tpu.core_type<tc>, window_params = [{transform_indices = @transform_0, window_bounds = array<i64: 32, 16>}, {pipeline_mode = #tpu.pipeline_mode<synchronous>, transform_indices = @transform_1, window_bounds = array<i64: 16, 512>}, {pipeline_mode = #tpu.pipeline_mode<synchronous>, transform_indices = @transform_2, window_bounds = array<i64: 128, 512>}, {pipeline_mode = #tpu.pipeline_mode<synchronous>, transform_indices = @transform_3, window_bounds = array<i64: 1, 512>}, {pipeline_mode = #tpu.pipeline_mode<synchronous>, transform_indices = @transform_4, window_bounds = array<i64: 128, 128>}, {pipeline_mode = #tpu.pipeline_mode<synchronous>, transform_indices = @transform_5, window_bounds = array<i64: 1, 128>}, {transform_indices = @transform_6, window_bounds = array<i64: 8, 128>}]} {
    %c0 = arith.constant 0 : index
    %c0_0 = arith.constant 0 : index
    %0 = vector.load %arg2[%c0, %c0_0] : memref<32x16xbf16, #tpu.memory_space<vmem>>, vector<32x16xbf16>
    %c0_1 = arith.constant 0 : index
    %c0_2 = arith.constant 0 : index
    %1 = vector.load %arg3[%c0_1, %c0_2] : memref<16x512xbf16, #tpu.memory_space<vmem>>, vector<16x512xbf16>
    %cst = arith.constant dense<0.000000e+00> : vector<32x512xf32>
    %2 = tpu.matmul %0, %1, %cst {dimension_numbers = #tpu.dot_dimension_numbers<[1], [0], [0], [1], [0, 0, 1, 1], [], []>} : vector<32x16xbf16>, vector<16x512xbf16>, vector<32x512xf32> -> vector<32x512xf32>
    %c0_3 = arith.constant 0 : index
    %c0_4 = arith.constant 0 : index
    %3 = vector.load %arg5[%c0_3, %c0_4] : memref<1x512xf32, #tpu.memory_space<vmem>>, vector<1x512xf32>
    %4 = vector.broadcast %3 : vector<1x512xf32> to vector<32x512xf32>
    %5 = arith.addf %2, %4 : vector<32x512xf32>
    %c0_5 = arith.constant 0 : index
    %c0_6 = arith.constant 0 : index
    %6 = vector.load %arg9[%c0_5, %c0_6] : memref<32x512xf32, #tpu.memory_space<vmem>>, vector<32x512xf32>
    tpu.vector_store %arg9[%c0_5, %c0_6], %5 {strides = array<i32>} : memref<32x512xf32, #tpu.memory_space<vmem>>, vector<32x512xf32>,
    %c0_7 = arith.constant 0 : index
    %c0_8 = arith.constant 0 : index
    %7 = vector.load %arg4[%c0_7, %c0_8] : memref<128x512xbf16, #tpu.memory_space<vmem>>, vector<128x512xbf16>
    %c0_i32 = arith.constant 0 : i32
    %8 = arith.cmpi eq, %arg1, %c0_i32 : i32
    %9 = arith.extui %8 : i1 to i32
    %c0_i32_9 = arith.constant 0 : i32
    %10 = arith.cmpi ne, %9, %c0_i32_9 : i32
    scf.if %10 {
      %c0_34 = arith.constant 0 : index
      %c0_35 = arith.constant 0 : index
      %90 = vector.load %arg9[%c0_34, %c0_35] : memref<32x512xf32, #tpu.memory_space<vmem>>, vector<8x512xf32>
      %cst_36 = arith.constant 0.000000e+00 : f32
      %91 = vector.broadcast %cst_36 : f32 to vector<8x128xf32>
      %92 = vector.extract_strided_slice %90 {offsets = [0, 0], sizes = [8, 384], strides = [1, 1]} : vector<8x512xf32> to vector<8x384xf32>
      %93 = arith.negf %92 : vector<8x384xf32>
      %94 = math.exp %93 : vector<8x384xf32>
      %cst_37 = arith.constant 1.000000e+00 : f32
      %95 = vector.broadcast %cst_37 : f32 to vector<8x384xf32>
      %96 = arith.addf %95, %94 : vector<8x384xf32>
      %97 = arith.divf %95, %96 : vector<8x384xf32>
      %98 = vector.extract_strided_slice %97 {offsets = [0, 0], sizes = [8, 128], strides = [1, 1]} : vector<8x384xf32> to vector<8x128xf32>
      %99 = vector.extract_strided_slice %97 {offsets = [0, 128], sizes = [8, 128], strides = [1, 1]} : vector<8x384xf32> to vector<8x128xf32>
      %100 = vector.extract_strided_slice %97 {offsets = [0, 256], sizes = [8, 128], strides = [1, 1]} : vector<8x384xf32> to vector<8x128xf32>
      %101 = vector.extract_strided_slice %90 {offsets = [0, 384], sizes = [8, 128], strides = [1, 1]} : vector<8x512xf32> to vector<8x128xf32>
      %102 = math.tanh %101 : vector<8x128xf32>
      %103 = arith.mulf %99, %91 : vector<8x128xf32>
      %104 = arith.mulf %98, %102 : vector<8x128xf32>
      %105 = arith.addf %103, %104 : vector<8x128xf32>
      %106 = math.tanh %105 : vector<8x128xf32>
      %107 = arith.mulf %100, %106 : vector<8x128xf32>
      %108 = arith.truncf %107 : vector<8x128xf32> to vector<8x128xbf16>
      %c0_38 = arith.constant 0 : index
      %c0_39 = arith.constant 0 : index
      %109 = vector.load %arg10[%c0_38, %c0_39] : memref<8x128xbf16, #tpu.memory_space<vmem>>, vector<8x128xbf16>
      tpu.vector_store %arg10[%c0_38, %c0_39], %108 {strides = array<i32>} : memref<8x128xbf16, #tpu.memory_space<vmem>>, vector<8x128xbf16>,
      %c0_40 = arith.constant 0 : index
      %c0_41 = arith.constant 0 : index
      %110 = vector.load %arg11[%c0_40, %c0_41] : memref<8x128xf32, #tpu.memory_space<vmem>>, vector<8x128xf32>
      tpu.vector_store %arg11[%c0_40, %c0_41], %105 {strides = array<i32>} : memref<8x128xf32, #tpu.memory_space<vmem>>, vector<8x128xf32>,
    } else {
    }
    %c0_i32_10 = arith.constant 0 : i32
    %11 = arith.cmpi ne, %arg1, %c0_i32_10 : i32
    %12 = arith.extui %11 : i1 to i32
    %c0_i32_11 = arith.constant 0 : i32
    %13 = arith.cmpi ne, %12, %c0_i32_11 : i32
    scf.if %13 {
      %c0_34 = arith.constant 0 : index
      %c0_35 = arith.constant 0 : index
      %90 = vector.load %arg10[%c0_34, %c0_35] : memref<8x128xbf16, #tpu.memory_space<vmem>>, vector<8x128xbf16>
      %c0_36 = arith.constant 0 : index
      %c0_37 = arith.constant 0 : index
      %91 = vector.load %arg11[%c0_36, %c0_37] : memref<8x128xf32, #tpu.memory_space<vmem>>, vector<8x128xf32>
      %c0_38 = arith.constant 0 : index
      %c0_39 = arith.constant 0 : index
      %92 = vector.load %arg9[%c0_38, %c0_39] : memref<32x512xf32, #tpu.memory_space<vmem>>, vector<8x512xf32>
      %cst_40 = arith.constant dense<0.000000e+00> : vector<8x512xf32>
      %93 = tpu.matmul %90, %7, %cst_40 {dimension_numbers = #tpu.dot_dimension_numbers<[1], [0], [0], [1], [0, 0, 1, 1], [], []>} : vector<8x128xbf16>, vector<128x512xbf16>, vector<8x512xf32> -> vector<8x512xf32>
      %94 = arith.addf %92, %93 : vector<8x512xf32>
      %95 = vector.extract_strided_slice %94 {offsets = [0, 0], sizes = [8, 384], strides = [1, 1]} : vector<8x512xf32> to vector<8x384xf32>
      %96 = arith.negf %95 : vector<8x384xf32>
      %97 = math.exp %96 : vector<8x384xf32>
      %cst_41 = arith.constant 1.000000e+00 : f32
      %98 = vector.broadcast %cst_41 : f32 to vector<8x384xf32>
      %99 = arith.addf %98, %97 : vector<8x384xf32>
      %100 = arith.divf %98, %99 : vector<8x384xf32>
      %101 = vector.extract_strided_slice %100 {offsets = [0, 0], sizes = [8, 128], strides = [1, 1]} : vector<8x384xf32> to vector<8x128xf32>
      %102 = vector.extract_strided_slice %100 {offsets = [0, 128], sizes = [8, 128], strides = [1, 1]} : vector<8x384xf32> to vector<8x128xf32>
      %103 = vector.extract_strided_slice %100 {offsets = [0, 256], sizes = [8, 128], strides = [1, 1]} : vector<8x384xf32> to vector<8x128xf32>
      %104 = vector.extract_strided_slice %94 {offsets = [0, 384], sizes = [8, 128], strides = [1, 1]} : vector<8x512xf32> to vector<8x128xf32>
      %105 = math.tanh %104 : vector<8x128xf32>
      %106 = arith.mulf %102, %91 : vector<8x128xf32>
      %107 = arith.mulf %101, %105 : vector<8x128xf32>
      %108 = arith.addf %106, %107 : vector<8x128xf32>
      %109 = math.tanh %108 : vector<8x128xf32>
      %110 = arith.mulf %103, %109 : vector<8x128xf32>
      %111 = arith.truncf %110 : vector<8x128xf32> to vector<8x128xbf16>
      %c0_42 = arith.constant 0 : index
      %c0_43 = arith.constant 0 : index
      %112 = vector.load %arg10[%c0_42, %c0_43] : memref<8x128xbf16, #tpu.memory_space<vmem>>, vector<8x128xbf16>
      tpu.vector_store %arg10[%c0_42, %c0_43], %111 {strides = array<i32>} : memref<8x128xbf16, #tpu.memory_space<vmem>>, vector<8x128xbf16>,
      %c0_44 = arith.constant 0 : index
      %c0_45 = arith.constant 0 : index
      %113 = vector.load %arg11[%c0_44, %c0_45] : memref<8x128xf32, #tpu.memory_space<vmem>>, vector<8x128xf32>
      tpu.vector_store %arg11[%c0_44, %c0_45], %108 {strides = array<i32>} : memref<8x128xf32, #tpu.memory_space<vmem>>, vector<8x128xf32>,
    } else {
    }
    %c0_12 = arith.constant 0 : index
    %c0_13 = arith.constant 0 : index
    %14 = vector.load %arg10[%c0_12, %c0_13] : memref<8x128xbf16, #tpu.memory_space<vmem>>, vector<8x128xbf16>
    %c0_14 = arith.constant 0 : index
    %c0_15 = arith.constant 0 : index
    %15 = vector.load %arg11[%c0_14, %c0_15] : memref<8x128xf32, #tpu.memory_space<vmem>>, vector<8x128xf32>
    %c1_i32 = arith.constant 1 : i32
    %c8_i32 = arith.constant 8 : i32
    %16 = arith.muli %c1_i32, %c8_i32 : i32
    %17 = tpu.assume_multiple %16, 8 : i32
    %18 = arith.index_cast %17 : i32 to index
    %c0_16 = arith.constant 0 : index
    %19 = vector.load %arg9[%18, %c0_16] : memref<32x512xf32, #tpu.memory_space<vmem>>, vector<8x512xf32>
    %cst_17 = arith.constant dense<0.000000e+00> : vector<8x512xf32>
    %20 = tpu.matmul %14, %7, %cst_17 {dimension_numbers = #tpu.dot_dimension_numbers<[1], [0], [0], [1], [0, 0, 1, 1], [], []>} : vector<8x128xbf16>, vector<128x512xbf16>, vector<8x512xf32> -> vector<8x512xf32>
    %21 = arith.addf %19, %20 : vector<8x512xf32>
    %22 = vector.extract_strided_slice %21 {offsets = [0, 0], sizes = [8, 384], strides = [1, 1]} : vector<8x512xf32> to vector<8x384xf32>
    %23 = arith.negf %22 : vector<8x384xf32>
    %24 = math.exp %23 : vector<8x384xf32>
    %cst_18 = arith.constant 1.000000e+00 : f32
    %25 = vector.broadcast %cst_18 : f32 to vector<8x384xf32>
    %26 = arith.addf %25, %24 : vector<8x384xf32>
    %27 = arith.divf %25, %26 : vector<8x384xf32>
    %28 = vector.extract_strided_slice %27 {offsets = [0, 0], sizes = [8, 128], strides = [1, 1]} : vector<8x384xf32> to vector<8x128xf32>
    %29 = vector.extract_strided_slice %27 {offsets = [0, 128], sizes = [8, 128], strides = [1, 1]} : vector<8x384xf32> to vector<8x128xf32>
    %30 = vector.extract_strided_slice %27 {offsets = [0, 256], sizes = [8, 128], strides = [1, 1]} : vector<8x384xf32> to vector<8x128xf32>
    %31 = vector.extract_strided_slice %21 {offsets = [0, 384], sizes = [8, 128], strides = [1, 1]} : vector<8x512xf32> to vector<8x128xf32>
    %32 = math.tanh %31 : vector<8x128xf32>
    %33 = arith.mulf %29, %15 : vector<8x128xf32>
    %34 = arith.mulf %28, %32 : vector<8x128xf32>
    %35 = arith.addf %33, %34 : vector<8x128xf32>
    %36 = math.tanh %35 : vector<8x128xf32>
    %37 = arith.mulf %30, %36 : vector<8x128xf32>
    %38 = arith.truncf %37 : vector<8x128xf32> to vector<8x128xbf16>
    %c2_i32 = arith.constant 2 : i32
    %c8_i32_19 = arith.constant 8 : i32
    %39 = arith.muli %c2_i32, %c8_i32_19 : i32
    %40 = tpu.assume_multiple %39, 8 : i32
    %41 = arith.index_cast %40 : i32 to index
    %c0_20 = arith.constant 0 : index
    %42 = vector.load %arg9[%41, %c0_20] : memref<32x512xf32, #tpu.memory_space<vmem>>, vector<8x512xf32>
    %cst_21 = arith.constant dense<0.000000e+00> : vector<8x512xf32>
    %43 = tpu.matmul %38, %7, %cst_21 {dimension_numbers = #tpu.dot_dimension_numbers<[1], [0], [0], [1], [0, 0, 1, 1], [], []>} : vector<8x128xbf16>, vector<128x512xbf16>, vector<8x512xf32> -> vector<8x512xf32>
    %44 = arith.addf %42, %43 : vector<8x512xf32>
    %45 = vector.extract_strided_slice %44 {offsets = [0, 0], sizes = [8, 384], strides = [1, 1]} : vector<8x512xf32> to vector<8x384xf32>
    %46 = arith.negf %45 : vector<8x384xf32>
    %47 = math.exp %46 : vector<8x384xf32>
    %cst_22 = arith.constant 1.000000e+00 : f32
    %48 = vector.broadcast %cst_22 : f32 to vector<8x384xf32>
    %49 = arith.addf %48, %47 : vector<8x384xf32>
    %50 = arith.divf %48, %49 : vector<8x384xf32>
    %51 = vector.extract_strided_slice %50 {offsets = [0, 0], sizes = [8, 128], strides = [1, 1]} : vector<8x384xf32> to vector<8x128xf32>
    %52 = vector.extract_strided_slice %50 {offsets = [0, 128], sizes = [8, 128], strides = [1, 1]} : vector<8x384xf32> to vector<8x128xf32>
    %53 = vector.extract_strided_slice %50 {offsets = [0, 256], sizes = [8, 128], strides = [1, 1]} : vector<8x384xf32> to vector<8x128xf32>
    %54 = vector.extract_strided_slice %44 {offsets = [0, 384], sizes = [8, 128], strides = [1, 1]} : vector<8x512xf32> to vector<8x128xf32>
    %55 = math.tanh %54 : vector<8x128xf32>
    %56 = arith.mulf %52, %35 : vector<8x128xf32>
    %57 = arith.mulf %51, %55 : vector<8x128xf32>
    %58 = arith.addf %56, %57 : vector<8x128xf32>
    %59 = math.tanh %58 : vector<8x128xf32>
    %60 = arith.mulf %53, %59 : vector<8x128xf32>
    %61 = arith.truncf %60 : vector<8x128xf32> to vector<8x128xbf16>
    %c3_i32 = arith.constant 3 : i32
    %c8_i32_23 = arith.constant 8 : i32
    %62 = arith.muli %c3_i32, %c8_i32_23 : i32
    %63 = tpu.assume_multiple %62, 8 : i32
    %64 = arith.index_cast %63 : i32 to index
    %c0_24 = arith.constant 0 : index
    %65 = vector.load %arg9[%64, %c0_24] : memref<32x512xf32, #tpu.memory_space<vmem>>, vector<8x512xf32>
    %cst_25 = arith.constant dense<0.000000e+00> : vector<8x512xf32>
    %66 = tpu.matmul %61, %7, %cst_25 {dimension_numbers = #tpu.dot_dimension_numbers<[1], [0], [0], [1], [0, 0, 1, 1], [], []>} : vector<8x128xbf16>, vector<128x512xbf16>, vector<8x512xf32> -> vector<8x512xf32>
    %67 = arith.addf %65, %66 : vector<8x512xf32>
    %68 = vector.extract_strided_slice %67 {offsets = [0, 0], sizes = [8, 384], strides = [1, 1]} : vector<8x512xf32> to vector<8x384xf32>
    %69 = arith.negf %68 : vector<8x384xf32>
    %70 = math.exp %69 : vector<8x384xf32>
    %cst_26 = arith.constant 1.000000e+00 : f32
    %71 = vector.broadcast %cst_26 : f32 to vector<8x384xf32>
    %72 = arith.addf %71, %70 : vector<8x384xf32>
    %73 = arith.divf %71, %72 : vector<8x384xf32>
    %74 = vector.extract_strided_slice %73 {offsets = [0, 0], sizes = [8, 128], strides = [1, 1]} : vector<8x384xf32> to vector<8x128xf32>
    %75 = vector.extract_strided_slice %73 {offsets = [0, 128], sizes = [8, 128], strides = [1, 1]} : vector<8x384xf32> to vector<8x128xf32>
    %76 = vector.extract_strided_slice %73 {offsets = [0, 256], sizes = [8, 128], strides = [1, 1]} : vector<8x384xf32> to vector<8x128xf32>
    %77 = vector.extract_strided_slice %67 {offsets = [0, 384], sizes = [8, 128], strides = [1, 1]} : vector<8x512xf32> to vector<8x128xf32>
    %78 = math.tanh %77 : vector<8x128xf32>
    %79 = arith.mulf %75, %58 : vector<8x128xf32>
    %80 = arith.mulf %74, %78 : vector<8x128xf32>
    %81 = arith.addf %79, %80 : vector<8x128xf32>
    %82 = math.tanh %81 : vector<8x128xf32>
    %83 = arith.mulf %76, %82 : vector<8x128xf32>
    %84 = arith.truncf %83 : vector<8x128xf32> to vector<8x128xbf16>
    %c3_i32_27 = arith.constant 3 : i32
    %c0_28 = arith.constant 0 : index
    %c0_29 = arith.constant 0 : index
    %85 = vector.load %arg10[%c0_28, %c0_29] : memref<8x128xbf16, #tpu.memory_space<vmem>>, vector<8x128xbf16>
    tpu.vector_store %arg10[%c0_28, %c0_29], %84 {strides = array<i32>} : memref<8x128xbf16, #tpu.memory_space<vmem>>, vector<8x128xbf16>,
    %c0_30 = arith.constant 0 : index
    %c0_31 = arith.constant 0 : index
    %86 = vector.load %arg11[%c0_30, %c0_31] : memref<8x128xf32, #tpu.memory_space<vmem>>, vector<8x128xf32>
    tpu.vector_store %arg11[%c0_30, %c0_31], %81 {strides = array<i32>} : memref<8x128xf32, #tpu.memory_space<vmem>>, vector<8x128xf32>,
    %c1_i32_32 = arith.constant 1 : i32
    %87 = arith.cmpi eq, %arg1, %c1_i32_32 : i32
    %88 = arith.extui %87 : i1 to i32
    %c0_i32_33 = arith.constant 0 : i32
    %89 = arith.cmpi ne, %88, %c0_i32_33 : i32
    scf.if %89 {
      %c0_34 = arith.constant 0 : index
      %c0_35 = arith.constant 0 : index
      %90 = vector.load %arg6[%c0_34, %c0_35] : memref<128x128xbf16, #tpu.memory_space<vmem>>, vector<128x128xbf16>
      %cst_36 = arith.constant dense<0.000000e+00> : vector<8x128xf32>
      %91 = tpu.matmul %84, %90, %cst_36 {dimension_numbers = #tpu.dot_dimension_numbers<[1], [0], [0], [1], [0, 0, 1, 1], [], []>} : vector<8x128xbf16>, vector<128x128xbf16>, vector<8x128xf32> -> vector<8x128xf32>
      %c0_37 = arith.constant 0 : index
      %c0_38 = arith.constant 0 : index
      %92 = vector.load %arg7[%c0_37, %c0_38] : memref<1x128xf32, #tpu.memory_space<vmem>>, vector<1x128xf32>
      %93 = vector.broadcast %92 : vector<1x128xf32> to vector<8x128xf32>
      %94 = arith.addf %91, %93 : vector<8x128xf32>
      %c0_39 = arith.constant 0 : index
      %c0_40 = arith.constant 0 : index
      %95 = vector.load %arg8[%c0_39, %c0_40] : memref<8x128xf32, #tpu.memory_space<vmem>>, vector<8x128xf32>
      tpu.vector_store %arg8[%c0_39, %c0_40], %94 {strides = array<i32>} : memref<8x128xf32, #tpu.memory_space<vmem>>, vector<8x128xf32>,
    } else {
    }
    return
  }
  func.func @transform_0(%arg0: i32, %arg1: i32) -> (i32, i32) {
    %c2_i32 = arith.constant 2 : i32
    %0 = arith.muli %arg0, %c2_i32 : i32
    %1 = arith.addi %0, %arg1 : i32
    %c0_i32 = arith.constant 0 : i32
    %c0_i32_0 = arith.constant 0 : i32
    return %1, %c0_i32 : i32, i32
  }
  func.func @transform_1(%arg0: i32, %arg1: i32) -> (i32, i32) {
    %c0_i32 = arith.constant 0 : i32
    %c0_i32_0 = arith.constant 0 : i32
    %c0_i32_1 = arith.constant 0 : i32
    return %c0_i32, %c0_i32_0 : i32, i32
  }
  func.func @transform_2(%arg0: i32, %arg1: i32) -> (i32, i32) {
    %c0_i32 = arith.constant 0 : i32
    %c0_i32_0 = arith.constant 0 : i32
    %c0_i32_1 = arith.constant 0 : i32
    return %c0_i32, %c0_i32_0 : i32, i32
  }
  func.func @transform_3(%arg0: i32, %arg1: i32) -> (i32, i32) {
    %c0_i32 = arith.constant 0 : i32
    %c0_i32_0 = arith.constant 0 : i32
    %c0_i32_1 = arith.constant 0 : i32
    return %c0_i32, %c0_i32_0 : i32, i32
  }
  func.func @transform_4(%arg0: i32, %arg1: i32) -> (i32, i32) {
    %c0_i32 = arith.constant 0 : i32
    %c0_i32_0 = arith.constant 0 : i32
    %c0_i32_1 = arith.constant 0 : i32
    return %c0_i32, %c0_i32_0 : i32, i32
  }
  func.func @transform_5(%arg0: i32, %arg1: i32) -> (i32, i32) {
    %c0_i32 = arith.constant 0 : i32
    %c0_i32_0 = arith.constant 0 : i32
    %c0_i32_1 = arith.constant 0 : i32
    return %c0_i32, %c0_i32_0 : i32, i32
  }
  func.func @transform_6(%arg0: i32, %arg1: i32) -> (i32, i32) {
    %c0_i32 = arith.constant 0 : i32
    %c0_i32_0 = arith.constant 0 : i32
    return %arg0, %c0_i32 : i32, i32
  }
}

</mosaic_0001>

<llo_original>
// kernel: tpu_custom_call.1
$region0: #{tpu_custom_call.1}
  #allocation0 [shape = 'u32[]', space=smem, size = 0x4, offset = 0x4, fixed_abs, tag = 'smem constant byte address 0x4 - core index']
  #allocation1 [shape = 'u32[144,128]{1,0:T(1,128)}', space=vmem, size = 0x12000, scoped, tag = 'internal scratch']
  #allocation2 [shape = 'f32[32,512]{1,0:T(8,128)}', space=vmem, size = 0x10000, scoped, tag = 'scratch operand']
  #allocation3 [shape = 'bf16[8,128]{1,0:T(8,128)(2,1)}', space=vmem, size = 0x800, scoped, tag = 'scratch operand']
  #allocation4 [shape = 'f32[8,128]{1,0:T(8,128)}', space=vmem, size = 0x1000, scoped, tag = 'scratch operand']
  %s0 = inlined_call_operand.vmem [shape: bf16[128,16], index: 0, kind: input, shape index: {}]
  %s1 = inlined_call_operand.hbm [shape: bf16[16,512], index: 1, kind: input, shape index: {}]
  %s2 = inlined_call_operand.hbm [shape: bf16[128,512], index: 2, kind: input, shape index: {}]
  %s3 = inlined_call_operand.vmem [shape: f32[1,512], index: 3, kind: input, shape index: {}]
  %s4 = inlined_call_operand.vmem [shape: bf16[128,128], index: 4, kind: input, shape index: {}]
  %s5 = inlined_call_operand.vmem [shape: f32[1,128], index: 5, kind: input, shape index: {}]
  %s6 = inlined_call_operand.hbm [shape: f32[16,128], index: 6, kind: output, shape index: {}]
  %s7 = sld [smem:[#allocation0]]
  $region77: #{tpu_custom_call.1} parent=0
    _
  %s9 = ssub.s32 1, %s7
  %s10 = scalar_select 0, %s9, %s7
  $region1: #{tpu_custom_call.1} parent=0
    #allocation5 [shape = 'u8[16384]{0}', space=vmem, size = 0x4000, scoped, tag = 'input window, operand 1, single buffered']
    #allocation6 [shape = 's32[2]{0}', space=sflag, size = 0x8, scoped, tag = 'scoped memory for tpu_custom_call.1']
    #allocation7 [shape = 's32[2]{0}', space=sflag, size = 0x8, scoped, tag = 'scoped memory for tpu_custom_call.1']
    #allocation8 [shape = 'u8[131072]{0}', space=vmem, size = 0x20000, scoped, tag = 'input window, operand 2, single buffered']
    #allocation9 [shape = 's32[1]{0}', space=sflag, size = 0x4, scoped, tag = 'scoped memory for tpu_custom_call.1']
    #allocation10 [shape = 'u8[8192]{0}', space=vmem, size = 0x2000, scoped, tag = 'output window, operand 0']
    %11 = vsyncpa [#allocation6], 0
    %12 = vsyncpa [#allocation9], 0
    %13 = vsyncpa [#allocation7], 0
    %s14 = scalar_lea.sflag [#allocation7], 1
    %15 = vsyncpa %s14, 0
    loop: start=0, step=1, limit=6
    $region2: #{tpu_custom_call.1} parent=1 // loop_pre_header
      _
    $region3: #{tpu_custom_call.1} parent=1 // loop_header
      %s17 = sphi 0, %s21
      %p18 = scmp.ge.s32.totalorder %s17, 6
      %s24 = sphi 0, %s36
      %s25 = sphi 0, %s32
      %s26 = sphi 0, %s24
      %s27 = sphi 0, %s25
      %s28 = sphi 0, %s26
      %s29 = sphi 0, %s27
      %s43 = sphi 0, %s45
      %s46 = sphi 0, %s43
      %s47 = sphi 0, %s46
      %s63 = sphi 0, %s47
      %s67 = sphi 0, %s67
      %s69 = sphi 0, %s67
      %s70 = sphi 0, %s69
      %s84 = sphi 0, %s70
      %s88 = sphi 0, %s88
      %s90 = sphi 0, %s88
      %s91 = sphi 0, %s90
      %s105 = sphi 0, %s91
      %s109 = sphi 0, %s109
      %s111 = sphi 0, %s109
      %s112 = sphi 0, %s111
      %s126 = sphi 0, %s112
      %s130 = sphi 0, %s130
      %s132 = sphi 0, %s130
      %s133 = sphi 0, %s132
      %s147 = sphi 0, %s133
      %s151 = sphi 0, %s151
      %s153 = sphi 0, %s151
      %s154 = sphi 0, %s153
      %s168 = sphi 0, %s154
      %s174 = sphi 0, %s176
      %s177 = sphi 0, %s174
      %s178 = sphi 0, %s177
      %s194 = sphi 0, %s178
    $region4: #{tpu_custom_call.1} parent=1 // loop_header_branch
      %20 = sbr.rel (%p18) target = $region8
    $region5: #{tpu_custom_call.1} parent=1 // loop_body
      %s22 = ssub.s32 %s17, 1
      %s23 = ssub.s32 %s17, 2
      %s30 = sadd.s32 1, %s25
      %p31 = scmp.ge.s32.totalorder %s30, 2
      %s32 = scalar_select %p31, 0, %s30
      %s33 = sadd.s32 1, %s24
      %s34 = scalar_select %p31, %s33, %s24
      %p35 = scmp.ge.s32.totalorder %s34, 2
      %s36 = scalar_select %p35, 0, %s34
      %s37 = smul.u32 %s24, 2
      %s38 = sadd.s32 %s37, %s25
      %s39 = smul.u32 %s36, 2
      %s40 = sadd.s32 %s39, %s32
      %s41 = ssub.s32 %s38, %s40
      %p42 = scmp.eq.s32.totalorder %s41, 0
      %s44 = sadd.s32 %s43, 1
      %s45 = scalar_select %p42, %s43, %s44
      %p48 = pneg %p42
      %p49 = scmp.eq.s32.totalorder %s17, 3
      %p50 = por %p48, %p49
      %p51 = scmp.ne.s32.totalorder %s43, %s46
      %p52 = scmp.eq.s32.totalorder %s17, 0
      %p53 = por %p51, %p52
      %p54 = scmp.ne.s32.totalorder %s43, %s46
      %p55 = scmp.eq.s32.totalorder %s22, 3
      %p56 = por %p54, %p55
      %p57 = scmp.ne.s32.totalorder %s46, %s47
      %p58 = scmp.eq.s32.totalorder %s22, 0
      %p59 = por %p57, %p58
      %p60 = scmp.ne.s32.totalorder %s46, %s47
      %p61 = scmp.eq.s32.totalorder %s23, 3
      %p62 = por %p60, %p61
      %p64 = scmp.ne.s32.totalorder %s47, %s63
      %p65 = scmp.eq.s32.totalorder %s23, 0
      %p66 = por %p64, %p65
      %s68 = sadd.s32 %s67, 1
      %p71 = scmp.eq.s32.totalorder %s17, 3
      %p72 = scmp.ne.s32.totalorder %s67, %s69
      %p73 = scmp.eq.s32.totalorder %s17, 0
      %p74 = por %p72, %p73
      %p75 = scmp.ne.s32.totalorder %s67, %s69
      %p76 = scmp.eq.s32.totalorder %s22, 3
      %p77 = por %p75, %p76
      %p78 = scmp.ne.s32.totalorder %s69, %s70
      %p79 = scmp.eq.s32.totalorder %s22, 0
      %p80 = por %p78, %p79
      %p81 = scmp.ne.s32.totalorder %s69, %s70
      %p82 = scmp.eq.s32.totalorder %s23, 3
      %p83 = por %p81, %p82
      %p85 = scmp.ne.s32.totalorder %s70, %s84
      %p86 = scmp.eq.s32.totalorder %s23, 0
      %p87 = por %p85, %p86
      %s89 = sadd.s32 %s88, 1
      %p92 = scmp.eq.s32.totalorder %s17, 3
      %p93 = scmp.ne.s32.totalorder %s88, %s90
      %p94 = scmp.eq.s32.totalorder %s17, 0
      %p95 = por %p93, %p94
      %p96 = scmp.ne.s32.totalorder %s88, %s90
      %p97 = scmp.eq.s32.totalorder %s22, 3
      %p98 = por %p96, %p97
      %p99 = scmp.ne.s32.totalorder %s90, %s91
      %p100 = scmp.eq.s32.totalorder %s22, 0
      %p101 = por %p99, %p100
      %p102 = scmp.ne.s32.totalorder %s90, %s91
      %p103 = scmp.eq.s32.totalorder %s23, 3
      %p104 = por %p102, %p103
      %p106 = scmp.ne.s32.totalorder %s91, %s105
      %p107 = scmp.eq.s32.totalorder %s23, 0
      %p108 = por %p106, %p107
      %s110 = sadd.s32 %s109, 1
      %p113 = scmp.eq.s32.totalorder %s17, 3
      %p114 = scmp.ne.s32.totalorder %s109, %s111
      %p115 = scmp.eq.s32.totalorder %s17, 0
      %p116 = por %p114, %p115
      %p117 = scmp.ne.s32.totalorder %s109, %s111
      %p118 = scmp.eq.s32.totalorder %s22, 3
      %p119 = por %p117, %p118
      %p120 = scmp.ne.s32.totalorder %s111, %s112
      %p121 = scmp.eq.s32.totalorder %s22, 0
      %p122 = por %p120, %p121
      %p123 = scmp.ne.s32.totalorder %s111, %s112
      %p124 = scmp.eq.s32.totalorder %s23, 3
      %p125 = por %p123, %p124
      %p127 = scmp.ne.s32.totalorder %s112, %s126
      %p128 = scmp.eq.s32.totalorder %s23, 0
      %p129 = por %p127, %p128
      %s131 = sadd.s32 %s130, 1
      %p134 = scmp.eq.s32.totalorder %s17, 3
      %p135 = scmp.ne.s32.totalorder %s130, %s132
      %p136 = scmp.eq.s32.totalorder %s17, 0
      %p137 = por %p135, %p136
      %p138 = scmp.ne.s32.totalorder %s130, %s132
      %p139 = scmp.eq.s32.totalorder %s22, 3
      %p140 = por %p138, %p139
      %p141 = scmp.ne.s32.totalorder %s132, %s133
      %p142 = scmp.eq.s32.totalorder %s22, 0
      %p143 = por %p141, %p142
      %p144 = scmp.ne.s32.totalorder %s132, %s133
      %p145 = scmp.eq.s32.totalorder %s23, 3
      %p146 = por %p144, %p145
      %p148 = scmp.ne.s32.totalorder %s133, %s147
      %p149 = scmp.eq.s32.totalorder %s23, 0
      %p150 = por %p148, %p149
      %s152 = sadd.s32 %s151, 1
      %p155 = scmp.eq.s32.totalorder %s17, 3
      %p156 = scmp.ne.s32.totalorder %s151, %s153
      %p157 = scmp.eq.s32.totalorder %s17, 0
      %p158 = por %p156, %p157
      %p159 = scmp.ne.s32.totalorder %s151, %s153
      %p160 = scmp.eq.s32.totalorder %s22, 3
      %p161 = por %p159, %p160
      %p162 = scmp.ne.s32.totalorder %s153, %s154
      %p163 = scmp.eq.s32.totalorder %s22, 0
      %p164 = por %p162, %p163
      %p165 = scmp.ne.s32.totalorder %s153, %s154
      %p166 = scmp.eq.s32.totalorder %s23, 3
      %p167 = por %p165, %p166
      %p169 = scmp.ne.s32.totalorder %s154, %s168
      %p170 = scmp.eq.s32.totalorder %s23, 0
      %p171 = por %p169, %p170
      %s172 = ssub.s32 %s24, %s36
      %p173 = scmp.eq.s32.totalorder %s172, 0
      %s175 = sadd.s32 %s174, 1
      %s176 = scalar_select %p173, %s174, %s175
      %p179 = pneg %p173
      %p180 = scmp.eq.s32.totalorder %s17, 3
      %p181 = por %p179, %p180
      %p182 = scmp.ne.s32.totalorder %s174, %s177
      %p183 = scmp.eq.s32.totalorder %s17, 0
      %p184 = por %p182, %p183
      %p185 = scmp.ne.s32.totalorder %s174, %s177
      %p186 = scmp.eq.s32.totalorder %s22, 3
      %p187 = por %p185, %p186
      %p188 = scmp.ne.s32.totalorder %s177, %s178
      %p189 = scmp.eq.s32.totalorder %s22, 0
      %p190 = por %p188, %p189
      %p191 = scmp.ne.s32.totalorder %s177, %s178
      %p192 = scmp.eq.s32.totalorder %s23, 3
      %p193 = por %p191, %p192
      %p195 = scmp.ne.s32.totalorder %s178, %s194
      %p196 = scmp.eq.s32.totalorder %s23, 0
      %p197 = por %p195, %p196
      %p198 = scmp.le.s32.totalorder 1, %s17
      %p199 = scmp.lt.s32.totalorder %s17, 5
      %p200 = pnand %p198, %p199
      %p201 = pneg %p200
      // Predicated region
      $region9: #{tpu_custom_call.1} parent=5 // pred_check
        _
      $region10: #{tpu_custom_call.1} parent=5 // pred_check_branch
        %203 = sbr.rel (%p200) target = $region12
      $region11: #{tpu_custom_call.1} parent=5 // pred_region
        %s204 = ssub.s32 %s17, 1
        // Predicated region
        $region13: #{tpu_custom_call.1} parent=11 // pred_check
          %p205 = pneg %p80
        $region14: #{tpu_custom_call.1} parent=11 // pred_check_branch
          %207 = sbr.rel (%p205) target = $region16
        $region15: #{tpu_custom_call.1} parent=11 // pred_region
          %s209 = ssub.s32 512, 512
          %210 = vsyncadd [#allocation6], %s209
          %s211 = sshll.u32 [#allocation5], 4
          %s212 = int_to_ptr.vmem [resolvable:$true] %s211
          %217 = dma.hbm_to_vmem [thread:$0]  %s1, 512, %s212, [#allocation6], 256, 256, 16
        $region16: #{tpu_custom_call.1} parent=11 // pred_fallthru
          _
        // Predicated region
        $region17: #{tpu_custom_call.1} parent=11 // pred_check
          %p218 = pneg %p101
        $region18: #{tpu_custom_call.1} parent=11 // pred_check_branch
          %220 = sbr.rel (%p218) target = $region20
        $region19: #{tpu_custom_call.1} parent=11 // pred_region
          %s222 = ssub.s32 4096, 4096
          %223 = vsyncadd [#allocation9], %s222
          %s224 = sshll.u32 [#allocation8], 4
          %s225 = int_to_ptr.vmem [resolvable:$true] %s224
          %230 = dma.hbm_to_vmem [thread:$0]  %s2, 4096, %s225, [#allocation9], 256, 256, 16
        $region20: #{tpu_custom_call.1} parent=11 // pred_fallthru
          _
        // Predicated region
        $region21: #{tpu_custom_call.1} parent=11 // pred_check
          %p231 = pneg %p122
        $region22: #{tpu_custom_call.1} parent=11 // pred_check_branch
          %233 = sbr.rel (%p231) target = $region24
        $region23: #{tpu_custom_call.1} parent=11 // pred_region
          _
        $region24: #{tpu_custom_call.1} parent=11 // pred_fallthru
          _
        // Predicated region
        $region25: #{tpu_custom_call.1} parent=11 // pred_check
          %p234 = pneg %p143
        $region26: #{tpu_custom_call.1} parent=11 // pred_check_branch
          %236 = sbr.rel (%p234) target = $region28
        $region27: #{tpu_custom_call.1} parent=11 // pred_region
          _
        $region28: #{tpu_custom_call.1} parent=11 // pred_fallthru
          _
        // Predicated region
        $region29: #{tpu_custom_call.1} parent=11 // pred_check
          %p237 = pneg %p164
        $region30: #{tpu_custom_call.1} parent=11 // pred_check_branch
          %239 = sbr.rel (%p237) target = $region32
        $region31: #{tpu_custom_call.1} parent=11 // pred_region
          _
        $region32: #{tpu_custom_call.1} parent=11 // pred_fallthru
          _
      $region12: #{tpu_custom_call.1} parent=5 // pred_fallthru
        _
      %p240 = scmp.lt.s32.totalorder %s17, 4
      // Predicated region
      $region33: #{tpu_custom_call.1} parent=5 // pred_check
        %p241 = pneg %p240
      $region34: #{tpu_custom_call.1} parent=5 // pred_check_branch
        %243 = sbr.rel (%p241) target = $region36
      $region35: #{tpu_custom_call.1} parent=5 // pred_region
        // Predicated region
        $region37: #{tpu_custom_call.1} parent=35 // pred_check
          %p244 = pneg %p53
        $region38: #{tpu_custom_call.1} parent=35 // pred_check_branch
          %246 = sbr.rel (%p244) target = $region40
        $region39: #{tpu_custom_call.1} parent=35 // pred_region
          %s247 = smul.u32 %s24, 2
          %s248 = sadd.s32 %s247, %s25
          %s249 = smul.u32 4, %s248
          %p250 = scmp.lt.s32.totalorder %s249, 15
          %s251 = scalar_select %p250, %s249, 15
          %s252 = smul.addr %s251, 4
          %s253 = scalar_lea.vmem %s0, %s252
          %s254 = smul.u32 %s24, 2
          %s255 = sadd.s32 %s254, %s25
          %s256 = smul.u32 4, %s255
        $region40: #{tpu_custom_call.1} parent=35 // pred_fallthru
          _
      $region36: #{tpu_custom_call.1} parent=5 // pred_fallthru
        _
      %p257 = scmp.le.s32.totalorder 1, %s17
      %p258 = scmp.lt.s32.totalorder %s17, 5
      %p259 = pnand %p257, %p258
      %p260 = pneg %p259
      // Predicated region
      $region41: #{tpu_custom_call.1} parent=5 // pred_check
        _
      $region42: #{tpu_custom_call.1} parent=5 // pred_check_branch
        %262 = sbr.rel (%p259) target = $region44
      $region43: #{tpu_custom_call.1} parent=5 // pred_region
        %s263 = ssub.s32 %s17, 1
        // Predicated region
        $region45: #{tpu_custom_call.1} parent=43 // pred_check
          %p264 = pneg %p80
        $region46: #{tpu_custom_call.1} parent=43 // pred_check_branch
          %266 = sbr.rel (%p264) target = $region48
        $region47: #{tpu_custom_call.1} parent=43 // pred_region
          %267 = dma.done [#allocation6], 512
        $region48: #{tpu_custom_call.1} parent=43 // pred_fallthru
          _
        // Predicated region
        $region49: #{tpu_custom_call.1} parent=43 // pred_check
          %p268 = pneg %p101
        $region50: #{tpu_custom_call.1} parent=43 // pred_check_branch
          %270 = sbr.rel (%p268) target = $region52
        $region51: #{tpu_custom_call.1} parent=43 // pred_region
          %271 = dma.done [#allocation9], 4096
        $region52: #{tpu_custom_call.1} parent=43 // pred_fallthru
          _
        %s272 = smul.u32 %s26, 2
        %s273 = sadd.s32 %s272, %s27
        %s274 = smul.u32 4, %s273
        %p275 = scmp.lt.s32.totalorder %s274, 15
        %s276 = scalar_select %p275, %s274, 15
        %s277 = smul.addr %s276, 4
        %s278 = scalar_lea.vmem %s0, %s277
        %p279 = pneg %p59
        %p280 = pneg %p56
        %p281 = pneg %p80
        %p282 = pneg %p77
        %p283 = pneg %p101
        %p284 = pneg %p98
        %p285 = pneg %p122
        %p286 = pneg %p119
        %p287 = pneg %p143
        %p288 = pneg %p140
        %p289 = pneg %p164
        %p290 = pneg %p161
        %p291 = pneg %p190
        %p292 = pneg %p187
        %s293 = sand.u32 %s177, 1
        %s294 = scalar_lea.sflag [#allocation7], %s293
        %s295 = sand.u32 %s177, 1
        %s296 = smul.addr %s295, 8
        %s297 = scalar_lea.vmem [#allocation10], %s296
        %s298 = smul.u32 %s26, 2
        %s299 = sadd.s32 %s298, %s27
        %s300 = smul.u32 4, %s299
        %p301 = scmp.lt.s32.totalorder %s300, 15
        %s302 = scalar_select %p301, %s300, 15
        %s303 = smul.addr %s302, 4
        %s304 = scalar_lea.vmem %s0, %s303
        %s305 = smul.u32 %s26, 2
        %s306 = sadd.s32 %s305, %s27
        %s307 = smul.u32 4, %s306
        %v309 = vld [vmem:[%s304] sm:$0xf]
        %v310 = vld [vmem:[%s304 + $0x4] sm:$0xf]
        %v311 = vld [vmem:[%s304 + $0x8] sm:$0xf]
        %v312 = vld [vmem:[%s304 + $0xc] sm:$0xf]
        %v313 = vld [vmem:[#allocation5] sm:$0xff]
        %v314 = vld [vmem:[#allocation5 + $0x8] sm:$0xff]
        %v315 = vld [vmem:[#allocation5 + $0x10] sm:$0xff]
        %v316 = vld [vmem:[#allocation5 + $0x18] sm:$0xff]
        %v317 = vld [vmem:[%s3] sm:$0xf]
        %v319 = vlaneseq
        %v320 = vshrl.u32 %v319, 7
        %v321 = vsub.s32 0, %v320
        %v322 = vrot.slane %v317, %v321
        %v323 = vlaneseq
        %v324 = vshrl.u32 %v323, 7
        %v325 = vsub.s32 1, %v324
        %v326 = vrot.slane %v317, %v325
        %v327 = vlaneseq
        %v328 = vshrl.u32 %v327, 7
        %v329 = vsub.s32 2, %v328
        %v330 = vrot.slane %v317, %v329
        %v331 = vlaneseq
        %v332 = vshrl.u32 %v331, 7
        %v333 = vsub.s32 3, %v332
        %v334 = vrot.slane %v317, %v333
        %v343 = vunpack.c.l.b16 %v309
        %v344 = vunpack.c.l.b16 %v310
        %v345 = vunpack.c.l.b16 %v311
        %v346 = vunpack.c.l.b16 %v312
        %v347 = vpack.c.b16 %v344, %v343
        %v348 = vpack.c.b16 %v346, %v345
        %v353 = vunpack.c.l.b16 %v313
        %v354 = vunpack.c.h.b16 %v313
        %v355 = vunpack.c.l.b16 %v314
        %v356 = vunpack.c.h.b16 %v314
        %v357 = vunpack.c.l.b16 %v315
        %v358 = vunpack.c.h.b16 %v315
        %v359 = vunpack.c.l.b16 %v316
        %v360 = vunpack.c.h.b16 %v316
        %v361 = vpack.c.b16 %v357, %v353
        %v362 = vpack.c.b16 %v358, %v354
        %v363 = vpack.c.b16 %v359, %v355
        %v364 = vpack.c.b16 %v360, %v356
        %vm369 = vcmask 130048
        %v371 = vsel %vm369, %v347, 0
        %v374 = vsel %vm369, %v348, 0
        %376 = vmatprep.subr.bf16.mxu0 %v362
        %377 = vmatpush1.bf16.msra.mxu0 %v361
        %378 = vmatprep.subr.bf16.mxu0 0
        %379 = vmatpush1.bf16.msra.mxu0 0
        %380 = vmatprep.subr.bf16.mxu0 0
        %381 = vmatpush1.bf16.msra.mxu0 0
        %382 = vmatprep.subr.bf16.mxu0 0
        %383 = vmatpush1.bf16.msra.mxu0 0
        %384 = vmatprep.subr.bf16.mxu0 0
        %385 = vmatpush1.bf16.msra.mxu0 0
        %386 = vmatprep.subr.bf16.mxu0 0
        %387 = vmatpush1.bf16.msra.mxu0 0
        %388 = vmatprep.subr.bf16.mxu0 0
        %389 = vmatpush1.bf16.msra.mxu0 0
        %390 = vmatprep.subr.bf16.mxu0 0
        %391 = vmatpush1.bf16.msra.mxu0 0
        %392 = vmatprep.subr.bf16.mxu0 0
        %393 = vmatpush1.bf16.msra.mxu0 0
        %394 = vmatprep.subr.bf16.mxu0 0
        %395 = vmatpush1.bf16.msra.mxu0 0
        %396 = vmatprep.subr.bf16.mxu0 0
        %397 = vmatpush1.bf16.msra.mxu0 0
        %398 = vmatprep.subr.bf16.mxu0 0
        %399 = vmatpush1.bf16.msra.mxu0 0
        %400 = vmatprep.subr.bf16.mxu0 0
        %401 = vmatpush1.bf16.msra.mxu0 0
        %402 = vmatprep.subr.bf16.mxu0 0
        %403 = vmatpush1.bf16.msra.mxu0 0
        %404 = vmatprep.subr.bf16.mxu0 0
        %405 = vmatpush1.bf16.msra.mxu0 0
        %406 = vmatprep.subr.bf16.mxu0 0
        %407 = vmatpush1.bf16.msra.mxu0 0
        %408 = vmatprep.mubr.bf16.mxu0 0
        %409 = vmatmul.mubr.bf16.gmra.mrb[0].mxu0 %v371
        %v410 = vpop.f32.mrb[0].mxu0
        %v411 = vadd.f32 %v322, %v410
        %v412 = vpop.f32.mrb[0].mxu0
        %v413 = vadd.f32 %v326, %v412
        %v414 = vpop.f32.mrb[0].mxu0
        %v415 = vadd.f32 %v322, %v414
        %v416 = vpop.f32.mrb[0].mxu0
        %v417 = vadd.f32 %v326, %v416
        %418 = vmatprep.mubr.bf16.mxu0 0
        %419 = vmatmul.mubr.bf16.gmra.mrb[0].mxu0 %v374
        %v420 = vpop.f32.mrb[0].mxu0
        %v421 = vadd.f32 %v322, %v420
        %v422 = vpop.f32.mrb[0].mxu0
        %v423 = vadd.f32 %v326, %v422
        %v424 = vpop.f32.mrb[0].mxu0
        %v425 = vadd.f32 %v322, %v424
        %v426 = vpop.f32.mrb[0].mxu0
        %v427 = vadd.f32 %v326, %v426
        %428 = vdwg.mxu0
        %429 = vmatprep.subr.bf16.mxu0 %v364
        %430 = vmatpush1.bf16.msra.mxu0 %v363
        %431 = vmatprep.subr.bf16.mxu0 0
        %432 = vmatpush1.bf16.msra.mxu0 0
        %433 = vmatprep.subr.bf16.mxu0 0
        %434 = vmatpush1.bf16.msra.mxu0 0
        %435 = vmatprep.subr.bf16.mxu0 0
        %436 = vmatpush1.bf16.msra.mxu0 0
        %437 = vmatprep.subr.bf16.mxu0 0
        %438 = vmatpush1.bf16.msra.mxu0 0
        %439 = vmatprep.subr.bf16.mxu0 0
        %440 = vmatpush1.bf16.msra.mxu0 0
        %441 = vmatprep.subr.bf16.mxu0 0
        %442 = vmatpush1.bf16.msra.mxu0 0
        %443 = vmatprep.subr.bf16.mxu0 0
        %444 = vmatpush1.bf16.msra.mxu0 0
        %445 = vmatprep.subr.bf16.mxu0 0
        %446 = vmatpush1.bf16.msra.mxu0 0
        %447 = vmatprep.subr.bf16.mxu0 0
        %448 = vmatpush1.bf16.msra.mxu0 0
        %449 = vmatprep.subr.bf16.mxu0 0
        %450 = vmatpush1.bf16.msra.mxu0 0
        %451 = vmatprep.subr.bf16.mxu0 0
        %452 = vmatpush1.bf16.msra.mxu0 0
        %453 = vmatprep.subr.bf16.mxu0 0
        %454 = vmatpush1.bf16.msra.mxu0 0
        %455 = vmatprep.subr.bf16.mxu0 0
        %456 = vmatpush1.bf16.msra.mxu0 0
        %457 = vmatprep.subr.bf16.mxu0 0
        %458 = vmatpush1.bf16.msra.mxu0 0
        %459 = vmatprep.subr.bf16.mxu0 0
        %460 = vmatpush1.bf16.msra.mxu0 0
        %461 = vmatprep.mubr.bf16.mxu0 0
        %462 = vmatmul.mubr.bf16.gmra.mrb[0].mxu0 %v371
        %v463 = vpop.f32.mrb[0].mxu0
        %v464 = vadd.f32 %v330, %v463
        %v465 = vpop.f32.mrb[0].mxu0
        %v466 = vadd.f32 %v334, %v465
        %v467 = vpop.f32.mrb[0].mxu0
        %v468 = vadd.f32 %v330, %v467
        %v469 = vpop.f32.mrb[0].mxu0
        %v470 = vadd.f32 %v334, %v469
        %471 = vmatprep.mubr.bf16.mxu0 0
        %472 = vmatmul.mubr.bf16.gmra.mrb[0].mxu0 %v374
        %v473 = vpop.f32.mrb[0].mxu0
        %v474 = vadd.f32 %v330, %v473
        %v475 = vpop.f32.mrb[0].mxu0
        %v476 = vadd.f32 %v334, %v475
        %v477 = vpop.f32.mrb[0].mxu0
        %v478 = vadd.f32 %v330, %v477
        %v479 = vpop.f32.mrb[0].mxu0
        %v480 = vadd.f32 %v334, %v479
        %481 = vdwg.mxu0
        %482 = vst [vmem:[#allocation2] sm:$0xff] %v411
        %483 = vst [vmem:[#allocation2 + $0x8] sm:$0xff] %v413
        %484 = vst [vmem:[#allocation2 + $0x10] sm:$0xff] %v464
        %485 = vst [vmem:[#allocation2 + $0x18] sm:$0xff] %v466
        %486 = vst [vmem:[#allocation2 + $0x20] sm:$0xff] %v415
        %487 = vst [vmem:[#allocation2 + $0x28] sm:$0xff] %v417
        %488 = vst [vmem:[#allocation2 + $0x30] sm:$0xff] %v468
        %489 = vst [vmem:[#allocation2 + $0x38] sm:$0xff] %v470
        %490 = vst [vmem:[#allocation2 + $0x40] sm:$0xff] %v421
        %491 = vst [vmem:[#allocation2 + $0x48] sm:$0xff] %v423
        %492 = vst [vmem:[#allocation2 + $0x50] sm:$0xff] %v474
        %493 = vst [vmem:[#allocation2 + $0x58] sm:$0xff] %v476
        %494 = vst [vmem:[#allocation2 + $0x60] sm:$0xff] %v425
        %495 = vst [vmem:[#allocation2 + $0x68] sm:$0xff] %v427
        %496 = vst [vmem:[#allocation2 + $0x70] sm:$0xff] %v478
        %497 = vst [vmem:[#allocation2 + $0x78] sm:$0xff] %v480
        %v498 = vld [vmem:[#allocation8] sm:$0xff]
        %v499 = vld [vmem:[#allocation8 + $0x8] sm:$0xff]
        %v500 = vld [vmem:[#allocation8 + $0x10] sm:$0xff]
        %v501 = vld [vmem:[#allocation8 + $0x18] sm:$0xff]
        %v502 = vld [vmem:[#allocation8 + $0x20] sm:$0xff]
        %v503 = vld [vmem:[#allocation8 + $0x28] sm:$0xff]
        %v504 = vld [vmem:[#allocation8 + $0x30] sm:$0xff]
        %v505 = vld [vmem:[#allocation8 + $0x38] sm:$0xff]
        %v506 = vld [vmem:[#allocation8 + $0x40] sm:$0xff]
        %v507 = vld [vmem:[#allocation8 + $0x48] sm:$0xff]
        %v508 = vld [vmem:[#allocation8 + $0x50] sm:$0xff]
        %v509 = vld [vmem:[#allocation8 + $0x58] sm:$0xff]
        %v510 = vld [vmem:[#allocation8 + $0x60] sm:$0xff]
        %v511 = vld [vmem:[#allocation8 + $0x68] sm:$0xff]
        %v512 = vld [vmem:[#allocation8 + $0x70] sm:$0xff]
        %v513 = vld [vmem:[#allocation8 + $0x78] sm:$0xff]
        %v514 = vld [vmem:[#allocation8 + $0x80] sm:$0xff]
        %v515 = vld [vmem:[#allocation8 + $0x88] sm:$0xff]
        %v516 = vld [vmem:[#allocation8 + $0x90] sm:$0xff]
        %v517 = vld [vmem:[#allocation8 + $0x98] sm:$0xff]
        %v518 = vld [vmem:[#allocation8 + $0xa0] sm:$0xff]
        %v519 = vld [vmem:[#allocation8 + $0xa8] sm:$0xff]
        %v520 = vld [vmem:[#allocation8 + $0xb0] sm:$0xff]
        %v521 = vld [vmem:[#allocation8 + $0xb8] sm:$0xff]
        %v522 = vld [vmem:[#allocation8 + $0xc0] sm:$0xff]
        %v523 = vld [vmem:[#allocation8 + $0xc8] sm:$0xff]
        %v524 = vld [vmem:[#allocation8 + $0xd0] sm:$0xff]
        %v525 = vld [vmem:[#allocation8 + $0xd8] sm:$0xff]
        %v526 = vld [vmem:[#allocation8 + $0xe0] sm:$0xff]
        %v527 = vld [vmem:[#allocation8 + $0xe8] sm:$0xff]
        %v528 = vld [vmem:[#allocation8 + $0xf0] sm:$0xff]
        %v529 = vld [vmem:[#allocation8 + $0xf8] sm:$0xff]
        %p530 = scmp.eq.s32.totalorder %s27, 0
        // Predicated region
        $region53: #{tpu_custom_call.1} parent=43 // pred_check
          %p531 = pneg %p530
        $region54: #{tpu_custom_call.1} parent=43 // pred_check_branch
          %533 = sbr.rel (%p531) target = $region56
        $region55: #{tpu_custom_call.1} parent=43 // pred_region
          %v534 = vld [vmem:[#allocation2] sm:$0xff]
          %v535 = vld [vmem:[#allocation2 + $0x8] sm:$0xff]
          %v536 = vld [vmem:[#allocation2 + $0x10] sm:$0xff]
          %v537 = vld [vmem:[#allocation2 + $0x18] sm:$0xff]
          %v538 = vxor.u32 %v534, 2147483648
          %v539 = vxor.u32 %v535, 2147483648
          %v540 = vxor.u32 %v536, 2147483648
          %v541 = vmul.f32 %v538, 1.442695
          %v542 = vpow.pop %v541
          %v543 = vmul.f32 %v539, 1.442695
          %v544 = vpow.pop %v543
          %v545 = vmul.f32 %v540, 1.442695
          %v546 = vpow.pop %v545
          %v547 = vadd.f32 %v542, 1.0
          %v548 = vadd.f32 %v544, 1.0
          %v549 = vadd.f32 %v546, 1.0
          %v550 = vrcp.pop %v547
          %v551 = vmul.f32 1.0, %v550
          %v552 = vrcp.pop %v548
          %v553 = vmul.f32 1.0, %v552
          %v554 = vrcp.pop %v549
          %v555 = vmul.f32 1.0, %v554
          %v556 = vtanh.pop %v537
          %v557 = vmul.f32 %v553, 0.0
          %v558 = vmul.f32 %v551, %v556
          %v559 = vadd.f32 %v557, %v558
          %v560 = vtanh.pop %v559
          %v561 = vmul.f32 %v555, %v560
          %v562 = vpack.c.bf16 %v561, %v561
          %563 = vst [vmem:[#allocation3] sm:$0xf] %v562
          %564 = vst [vmem:[#allocation4] sm:$0xff] %v559
        $region56: #{tpu_custom_call.1} parent=43 // pred_fallthru
          _
        %p565 = scmp.ne.s32.totalorder %s27, 0
        // Predicated region
        $region57: #{tpu_custom_call.1} parent=43 // pred_check
          %p566 = pneg %p565
        $region58: #{tpu_custom_call.1} parent=43 // pred_check_branch
          %568 = sbr.rel (%p566) target = $region60
        $region59: #{tpu_custom_call.1} parent=43 // pred_region
          %v569 = vld [vmem:[#allocation3] sm:$0xf]
          %v570 = vld [vmem:[#allocation4] sm:$0xff]
          %v571 = vld [vmem:[#allocation2] sm:$0xff]
          %v572 = vld [vmem:[#allocation2 + $0x8] sm:$0xff]
          %v573 = vld [vmem:[#allocation2 + $0x10] sm:$0xff]
          %v574 = vld [vmem:[#allocation2 + $0x18] sm:$0xff]
          %v607 = vunpack.c.l.b16 %v498
          %v608 = vunpack.c.h.b16 %v498
          %v609 = vunpack.c.l.b16 %v499
          %v610 = vunpack.c.h.b16 %v499
          %v611 = vunpack.c.l.b16 %v500
          %v612 = vunpack.c.h.b16 %v500
          %v613 = vunpack.c.l.b16 %v501
          %v614 = vunpack.c.h.b16 %v501
          %v615 = vunpack.c.l.b16 %v502
          %v616 = vunpack.c.h.b16 %v502
          %v617 = vunpack.c.l.b16 %v503
          %v618 = vunpack.c.h.b16 %v503
          %v619 = vunpack.c.l.b16 %v504
          %v620 = vunpack.c.h.b16 %v504
          %v621 = vunpack.c.l.b16 %v505
          %v622 = vunpack.c.h.b16 %v505
          %v623 = vunpack.c.l.b16 %v506
          %v624 = vunpack.c.h.b16 %v506
          %v625 = vunpack.c.l.b16 %v507
          %v626 = vunpack.c.h.b16 %v507
          %v627 = vunpack.c.l.b16 %v508
          %v628 = vunpack.c.h.b16 %v508
          %v629 = vunpack.c.l.b16 %v509
          %v630 = vunpack.c.h.b16 %v509
          %v631 = vunpack.c.l.b16 %v510
          %v632 = vunpack.c.h.b16 %v510
          %v633 = vunpack.c.l.b16 %v511
          %v634 = vunpack.c.h.b16 %v511
          %v635 = vunpack.c.l.b16 %v512
          %v636 = vunpack.c.h.b16 %v512
          %v637 = vunpack.c.l.b16 %v513
          %v638 = vunpack.c.h.b16 %v513
          %v639 = vunpack.c.l.b16 %v514
          %v640 = vunpack.c.h.b16 %v514
          %v641 = vunpack.c.l.b16 %v515
          %v642 = vunpack.c.h.b16 %v515
          %v643 = vunpack.c.l.b16 %v516
          %v644 = vunpack.c.h.b16 %v516
          %v645 = vunpack.c.l.b16 %v517
          %v646 = vunpack.c.h.b16 %v517
          %v647 = vunpack.c.l.b16 %v518
          %v648 = vunpack.c.h.b16 %v518
          %v649 = vunpack.c.l.b16 %v519
          %v650 = vunpack.c.h.b16 %v519
          %v651 = vunpack.c.l.b16 %v520
          %v652 = vunpack.c.h.b16 %v520
          %v653 = vunpack.c.l.b16 %v521
          %v654 = vunpack.c.h.b16 %v521
          %v655 = vunpack.c.l.b16 %v522
          %v656 = vunpack.c.h.b16 %v522
          %v657 = vunpack.c.l.b16 %v523
          %v658 = vunpack.c.h.b16 %v523
          %v659 = vunpack.c.l.b16 %v524
          %v660 = vunpack.c.h.b16 %v524
          %v661 = vunpack.c.l.b16 %v525
          %v662 = vunpack.c.h.b16 %v525
          %v663 = vunpack.c.l.b16 %v526
          %v664 = vunpack.c.h.b16 %v526
          %v665 = vunpack.c.l.b16 %v527
          %v666 = vunpack.c.h.b16 %v527
          %v667 = vunpack.c.l.b16 %v528
          %v668 = vunpack.c.h.b16 %v528
          %v669 = vunpack.c.l.b16 %v529
          %v670 = vunpack.c.h.b16 %v529
          %v671 = vpack.c.b16 %v611, %v607
          %v672 = vpack.c.b16 %v612, %v608
          %v673 = vpack.c.b16 %v613, %v609
          %v674 = vpack.c.b16 %v614, %v610
          %v675 = vpack.c.b16 %v619, %v615
          %v676 = vpack.c.b16 %v620, %v616
          %v677 = vpack.c.b16 %v621, %v617
          %v678 = vpack.c.b16 %v622, %v618
          %v679 = vpack.c.b16 %v627, %v623
          %v680 = vpack.c.b16 %v628, %v624
          %v681 = vpack.c.b16 %v629, %v625
          %v682 = vpack.c.b16 %v630, %v626
          %v683 = vpack.c.b16 %v635, %v631
          %v684 = vpack.c.b16 %v636, %v632
          %v685 = vpack.c.b16 %v637, %v633
          %v686 = vpack.c.b16 %v638, %v634
          %v687 = vpack.c.b16 %v643, %v639
          %v688 = vpack.c.b16 %v644, %v640
          %v689 = vpack.c.b16 %v645, %v641
          %v690 = vpack.c.b16 %v646, %v642
          %v691 = vpack.c.b16 %v651, %v647
          %v692 = vpack.c.b16 %v652, %v648
          %v693 = vpack.c.b16 %v653, %v649
          %v694 = vpack.c.b16 %v654, %v650
          %v695 = vpack.c.b16 %v659, %v655
          %v696 = vpack.c.b16 %v660, %v656
          %v697 = vpack.c.b16 %v661, %v657
          %v698 = vpack.c.b16 %v662, %v658
          %v699 = vpack.c.b16 %v667, %v663
          %v700 = vpack.c.b16 %v668, %v664
          %v701 = vpack.c.b16 %v669, %v665
          %v702 = vpack.c.b16 %v670, %v666
          %735 = vmatprep.subr.bf16.mxu0 %v672
          %736 = vmatpush1.bf16.msra.mxu0 %v671
          %737 = vmatprep.subr.bf16.mxu0 %v676
          %738 = vmatpush1.bf16.msra.mxu0 %v675
          %739 = vmatprep.subr.bf16.mxu0 %v680
          %740 = vmatpush1.bf16.msra.mxu0 %v679
          %741 = vmatprep.subr.bf16.mxu0 %v684
          %742 = vmatpush1.bf16.msra.mxu0 %v683
          %743 = vmatprep.subr.bf16.mxu0 %v688
          %744 = vmatpush1.bf16.msra.mxu0 %v687
          %745 = vmatprep.subr.bf16.mxu0 %v692
          %746 = vmatpush1.bf16.msra.mxu0 %v691
          %747 = vmatprep.subr.bf16.mxu0 %v696
          %748 = vmatpush1.bf16.msra.mxu0 %v695
          %749 = vmatprep.subr.bf16.mxu0 %v700
          %750 = vmatpush1.bf16.msra.mxu0 %v699
          %751 = vmatprep.subr.bf16.mxu0 0
          %752 = vmatpush1.bf16.msra.mxu0 0
          %753 = vmatprep.subr.bf16.mxu0 0
          %754 = vmatpush1.bf16.msra.mxu0 0
          %755 = vmatprep.subr.bf16.mxu0 0
          %756 = vmatpush1.bf16.msra.mxu0 0
          %757 = vmatprep.subr.bf16.mxu0 0
          %758 = vmatpush1.bf16.msra.mxu0 0
          %759 = vmatprep.subr.bf16.mxu0 0
          %760 = vmatpush1.bf16.msra.mxu0 0
          %761 = vmatprep.subr.bf16.mxu0 0
          %762 = vmatpush1.bf16.msra.mxu0 0
          %763 = vmatprep.subr.bf16.mxu0 0
          %764 = vmatpush1.bf16.msra.mxu0 0
          %765 = vmatprep.subr.bf16.mxu0 0
          %766 = vmatpush1.bf16.msra.mxu0 0
          %767 = vmatprep.mubr.bf16.mxu0 0
          %768 = vmatmul.mubr.bf16.gmra.mrb[0].mxu0 %v569
          %v769 = vpop.f32.mrb[0].mxu0
          %v770 = vadd.f32 0.0, %v769
          %v771 = vpop.f32.mrb[0].mxu0
          %v772 = vadd.f32 0.0, %v771
          %v773 = vpop.f32.mrb[0].mxu0
          %v774 = vpop.f32.mrb[0].mxu0
          %775 = vdwg.mxu0
          %776 = vmatprep.subr.bf16.mxu0 %v674
          %777 = vmatpush1.bf16.msra.mxu0 %v673
          %778 = vmatprep.subr.bf16.mxu0 %v678
          %779 = vmatpush1.bf16.msra.mxu0 %v677
          %780 = vmatprep.subr.bf16.mxu0 %v682
          %781 = vmatpush1.bf16.msra.mxu0 %v681
          %782 = vmatprep.subr.bf16.mxu0 %v686
          %783 = vmatpush1.bf16.msra.mxu0 %v685
          %784 = vmatprep.subr.bf16.mxu0 %v690
          %785 = vmatpush1.bf16.msra.mxu0 %v689
          %786 = vmatprep.subr.bf16.mxu0 %v694
          %787 = vmatpush1.bf16.msra.mxu0 %v693
          %788 = vmatprep.subr.bf16.mxu0 %v698
          %789 = vmatpush1.bf16.msra.mxu0 %v697
          %790 = vmatprep.subr.bf16.mxu0 %v702
          %791 = vmatpush1.bf16.msra.mxu0 %v701
          %792 = vmatprep.subr.bf16.mxu0 0
          %793 = vmatpush1.bf16.msra.mxu0 0
          %794 = vmatprep.subr.bf16.mxu0 0
          %795 = vmatpush1.bf16.msra.mxu0 0
          %796 = vmatprep.subr.bf16.mxu0 0
          %797 = vmatpush1.bf16.msra.mxu0 0
          %798 = vmatprep.subr.bf16.mxu0 0
          %799 = vmatpush1.bf16.msra.mxu0 0
          %800 = vmatprep.subr.bf16.mxu0 0
          %801 = vmatpush1.bf16.msra.mxu0 0
          %802 = vmatprep.subr.bf16.mxu0 0
          %803 = vmatpush1.bf16.msra.mxu0 0
          %804 = vmatprep.subr.bf16.mxu0 0
          %805 = vmatpush1.bf16.msra.mxu0 0
          %806 = vmatprep.subr.bf16.mxu0 0
          %807 = vmatpush1.bf16.msra.mxu0 0
          %808 = vmatprep.mubr.bf16.mxu0 0
          %809 = vmatmul.mubr.bf16.gmra.mrb[0].mxu0 %v569
          %v810 = vpop.f32.mrb[0].mxu0
          %v811 = vadd.f32 0.0, %v810
          %v812 = vpop.f32.mrb[0].mxu0
          %v813 = vadd.f32 0.0, %v812
          %v814 = vpop.f32.mrb[0].mxu0
          %v815 = vpop.f32.mrb[0].mxu0
          %816 = vdwg.mxu0
          %v817 = vadd.f32 %v571, %v770
          %v818 = vadd.f32 %v572, %v772
          %v819 = vadd.f32 %v573, %v811
          %v820 = vadd.f32 %v574, %v813
          %v821 = vxor.u32 %v817, 2147483648
          %v822 = vxor.u32 %v818, 2147483648
          %v823 = vxor.u32 %v819, 2147483648
          %v824 = vmul.f32 %v821, 1.442695
          %v825 = vpow.pop %v824
          %v826 = vmul.f32 %v822, 1.442695
          %v827 = vpow.pop %v826
          %v828 = vmul.f32 %v823, 1.442695
          %v829 = vpow.pop %v828
          %v830 = vadd.f32 %v825, 1.0
          %v831 = vadd.f32 %v827, 1.0
          %v832 = vadd.f32 %v829, 1.0
          %v833 = vrcp.pop %v830
          %v834 = vmul.f32 1.0, %v833
          %v835 = vrcp.pop %v831
          %v836 = vmul.f32 1.0, %v835
          %v837 = vrcp.pop %v832
          %v838 = vmul.f32 1.0, %v837
          %v839 = vtanh.pop %v820
          %v840 = vmul.f32 %v836, %v570
          %v841 = vmul.f32 %v834, %v839
          %v842 = vadd.f32 %v840, %v841
          %v843 = vtanh.pop %v842
          %v844 = vmul.f32 %v838, %v843
          %v845 = vpack.c.bf16 %v844, %v844
          %846 = vst [vmem:[#allocation3] sm:$0xf] %v845
          %847 = vst [vmem:[#allocation4] sm:$0xff] %v842
        $region60: #{tpu_custom_call.1} parent=43 // pred_fallthru
          _
        %v848 = vld [vmem:[#allocation3] sm:$0xf]
        %v849 = vld [vmem:[#allocation4] sm:$0xff]
        %s850 = smul.u32 1, 4
        %s851 = smul.addr %s850, 8
        %s852 = scalar_lea.vmem [#allocation2], %s851
        %v853 = vld [vmem:[%s852] sm:$0xff]
        %v854 = vld [vmem:[%s852 + $0x8] sm:$0xff]
        %v855 = vld [vmem:[%s852 + $0x10] sm:$0xff]
        %v856 = vld [vmem:[%s852 + $0x18] sm:$0xff]
        %v889 = vunpack.c.l.b16 %v498
        %v890 = vunpack.c.h.b16 %v498
        %v891 = vunpack.c.l.b16 %v499
        %v892 = vunpack.c.h.b16 %v499
        %v893 = vunpack.c.l.b16 %v500
        %v894 = vunpack.c.h.b16 %v500
        %v895 = vunpack.c.l.b16 %v501
        %v896 = vunpack.c.h.b16 %v501
        %v897 = vunpack.c.l.b16 %v502
        %v898 = vunpack.c.h.b16 %v502
        %v899 = vunpack.c.l.b16 %v503
        %v900 = vunpack.c.h.b16 %v503
        %v901 = vunpack.c.l.b16 %v504
        %v902 = vunpack.c.h.b16 %v504
        %v903 = vunpack.c.l.b16 %v505
        %v904 = vunpack.c.h.b16 %v505
        %v905 = vunpack.c.l.b16 %v506
        %v906 = vunpack.c.h.b16 %v506
        %v907 = vunpack.c.l.b16 %v507
        %v908 = vunpack.c.h.b16 %v507
        %v909 = vunpack.c.l.b16 %v508
        %v910 = vunpack.c.h.b16 %v508
        %v911 = vunpack.c.l.b16 %v509
        %v912 = vunpack.c.h.b16 %v509
        %v913 = vunpack.c.l.b16 %v510
        %v914 = vunpack.c.h.b16 %v510
        %v915 = vunpack.c.l.b16 %v511
        %v916 = vunpack.c.h.b16 %v511
        %v917 = vunpack.c.l.b16 %v512
        %v918 = vunpack.c.h.b16 %v512
        %v919 = vunpack.c.l.b16 %v513
        %v920 = vunpack.c.h.b16 %v513
        %v921 = vunpack.c.l.b16 %v514
        %v922 = vunpack.c.h.b16 %v514
        %v923 = vunpack.c.l.b16 %v515
        %v924 = vunpack.c.h.b16 %v515
        %v925 = vunpack.c.l.b16 %v516
        %v926 = vunpack.c.h.b16 %v516
        %v927 = vunpack.c.l.b16 %v517
        %v928 = vunpack.c.h.b16 %v517
        %v929 = vunpack.c.l.b16 %v518
        %v930 = vunpack.c.h.b16 %v518
        %v931 = vunpack.c.l.b16 %v519
        %v932 = vunpack.c.h.b16 %v519
        %v933 = vunpack.c.l.b16 %v520
        %v934 = vunpack.c.h.b16 %v520
        %v935 = vunpack.c.l.b16 %v521
        %v936 = vunpack.c.h.b16 %v521
        %v937 = vunpack.c.l.b16 %v522
        %v938 = vunpack.c.h.b16 %v522
        %v939 = vunpack.c.l.b16 %v523
        %v940 = vunpack.c.h.b16 %v523
        %v941 = vunpack.c.l.b16 %v524
        %v942 = vunpack.c.h.b16 %v524
        %v943 = vunpack.c.l.b16 %v525
        %v944 = vunpack.c.h.b16 %v525
        %v945 = vunpack.c.l.b16 %v526
        %v946 = vunpack.c.h.b16 %v526
        %v947 = vunpack.c.l.b16 %v527
        %v948 = vunpack.c.h.b16 %v527
        %v949 = vunpack.c.l.b16 %v528
        %v950 = vunpack.c.h.b16 %v528
        %v951 = vunpack.c.l.b16 %v529
        %v952 = vunpack.c.h.b16 %v529
        %v953 = vpack.c.b16 %v893, %v889
        %v954 = vpack.c.b16 %v894, %v890
        %v955 = vpack.c.b16 %v895, %v891
        %v956 = vpack.c.b16 %v896, %v892
        %v957 = vpack.c.b16 %v901, %v897
        %v958 = vpack.c.b16 %v902, %v898
        %v959 = vpack.c.b16 %v903, %v899
        %v960 = vpack.c.b16 %v904, %v900
        %v961 = vpack.c.b16 %v909, %v905
        %v962 = vpack.c.b16 %v910, %v906
        %v963 = vpack.c.b16 %v911, %v907
        %v964 = vpack.c.b16 %v912, %v908
        %v965 = vpack.c.b16 %v917, %v913
        %v966 = vpack.c.b16 %v918, %v914
        %v967 = vpack.c.b16 %v919, %v915
        %v968 = vpack.c.b16 %v920, %v916
        %v969 = vpack.c.b16 %v925, %v921
        %v970 = vpack.c.b16 %v926, %v922
        %v971 = vpack.c.b16 %v927, %v923
        %v972 = vpack.c.b16 %v928, %v924
        %v973 = vpack.c.b16 %v933, %v929
        %v974 = vpack.c.b16 %v934, %v930
        %v975 = vpack.c.b16 %v935, %v931
        %v976 = vpack.c.b16 %v936, %v932
        %v977 = vpack.c.b16 %v941, %v937
        %v978 = vpack.c.b16 %v942, %v938
        %v979 = vpack.c.b16 %v943, %v939
        %v980 = vpack.c.b16 %v944, %v940
        %v981 = vpack.c.b16 %v949, %v945
        %v982 = vpack.c.b16 %v950, %v946
        %v983 = vpack.c.b16 %v951, %v947
        %v984 = vpack.c.b16 %v952, %v948
        %1017 = vmatprep.subr.bf16.mxu0 %v954
        %1018 = vmatpush1.bf16.msra.mxu0 %v953
        %1019 = vmatprep.subr.bf16.mxu0 %v958
        %1020 = vmatpush1.bf16.msra.mxu0 %v957
        %1021 = vmatprep.subr.bf16.mxu0 %v962
        %1022 = vmatpush1.bf16.msra.mxu0 %v961
        %1023 = vmatprep.subr.bf16.mxu0 %v966
        %1024 = vmatpush1.bf16.msra.mxu0 %v965
        %1025 = vmatprep.subr.bf16.mxu0 %v970
        %1026 = vmatpush1.bf16.msra.mxu0 %v969
        %1027 = vmatprep.subr.bf16.mxu0 %v974
        %1028 = vmatpush1.bf16.msra.mxu0 %v973
        %1029 = vmatprep.subr.bf16.mxu0 %v978
        %1030 = vmatpush1.bf16.msra.mxu0 %v977
        %1031 = vmatprep.subr.bf16.mxu0 %v982
        %1032 = vmatpush1.bf16.msra.mxu0 %v981
        %1033 = vmatprep.subr.bf16.mxu0 0
        %1034 = vmatpush1.bf16.msra.mxu0 0
        %1035 = vmatprep.subr.bf16.mxu0 0
        %1036 = vmatpush1.bf16.msra.mxu0 0
        %1037 = vmatprep.subr.bf16.mxu0 0
        %1038 = vmatpush1.bf16.msra.mxu0 0
        %1039 = vmatprep.subr.bf16.mxu0 0
        %1040 = vmatpush1.bf16.msra.mxu0 0
        %1041 = vmatprep.subr.bf16.mxu0 0
        %1042 = vmatpush1.bf16.msra.mxu0 0
        %1043 = vmatprep.subr.bf16.mxu0 0
        %1044 = vmatpush1.bf16.msra.mxu0 0
        %1045 = vmatprep.subr.bf16.mxu0 0
        %1046 = vmatpush1.bf16.msra.mxu0 0
        %1047 = vmatprep.subr.bf16.mxu0 0
        %1048 = vmatpush1.bf16.msra.mxu0 0
        %1049 = vmatprep.mubr.bf16.mxu0 0
        %1050 = vmatmul.mubr.bf16.gmra.mrb[0].mxu0 %v848
        %v1051 = vpop.f32.mrb[0].mxu0
        %v1052 = vadd.f32 0.0, %v1051
        %v1053 = vpop.f32.mrb[0].mxu0
        %v1054 = vadd.f32 0.0, %v1053
        %v1055 = vpop.f32.mrb[0].mxu0
        %v1056 = vpop.f32.mrb[0].mxu0
        %1057 = vdwg.mxu0
        %1058 = vmatprep.subr.bf16.mxu0 %v956
        %1059 = vmatpush1.bf16.msra.mxu0 %v955
        %1060 = vmatprep.subr.bf16.mxu0 %v960
        %1061 = vmatpush1.bf16.msra.mxu0 %v959
        %1062 = vmatprep.subr.bf16.mxu0 %v964
        %1063 = vmatpush1.bf16.msra.mxu0 %v963
        %1064 = vmatprep.subr.bf16.mxu0 %v968
        %1065 = vmatpush1.bf16.msra.mxu0 %v967
        %1066 = vmatprep.subr.bf16.mxu0 %v972
        %1067 = vmatpush1.bf16.msra.mxu0 %v971
        %1068 = vmatprep.subr.bf16.mxu0 %v976
        %1069 = vmatpush1.bf16.msra.mxu0 %v975
        %1070 = vmatprep.subr.bf16.mxu0 %v980
        %1071 = vmatpush1.bf16.msra.mxu0 %v979
        %1072 = vmatprep.subr.bf16.mxu0 %v984
        %1073 = vmatpush1.bf16.msra.mxu0 %v983
        %1074 = vmatprep.subr.bf16.mxu0 0
        %1075 = vmatpush1.bf16.msra.mxu0 0
        %1076 = vmatprep.subr.bf16.mxu0 0
        %1077 = vmatpush1.bf16.msra.mxu0 0
        %1078 = vmatprep.subr.bf16.mxu0 0
        %1079 = vmatpush1.bf16.msra.mxu0 0
        %1080 = vmatprep.subr.bf16.mxu0 0
        %1081 = vmatpush1.bf16.msra.mxu0 0
        %1082 = vmatprep.subr.bf16.mxu0 0
        %1083 = vmatpush1.bf16.msra.mxu0 0
        %1084 = vmatprep.subr.bf16.mxu0 0
        %1085 = vmatpush1.bf16.msra.mxu0 0
        %1086 = vmatprep.subr.bf16.mxu0 0
        %1087 = vmatpush1.bf16.msra.mxu0 0
        %1088 = vmatprep.subr.bf16.mxu0 0
        %1089 = vmatpush1.bf16.msra.mxu0 0
        %1090 = vmatprep.mubr.bf16.mxu0 0
        %1091 = vmatmul.mubr.bf16.gmra.mrb[0].mxu0 %v848
        %v1092 = vpop.f32.mrb[0].mxu0
        %v1093 = vadd.f32 0.0, %v1092
        %v1094 = vpop.f32.mrb[0].mxu0
        %v1095 = vadd.f32 0.0, %v1094
        %v1096 = vpop.f32.mrb[0].mxu0
        %v1097 = vpop.f32.mrb[0].mxu0
        %1098 = vdwg.mxu0
        %v1099 = vadd.f32 %v853, %v1052
        %v1100 = vadd.f32 %v854, %v1054
        %v1101 = vadd.f32 %v855, %v1093
        %v1102 = vadd.f32 %v856, %v1095
        %v1103 = vxor.u32 %v1099, 2147483648
        %v1104 = vxor.u32 %v1100, 2147483648
        %v1105 = vxor.u32 %v1101, 2147483648
        %v1106 = vmul.f32 %v1103, 1.442695
        %v1107 = vpow.pop %v1106
        %v1108 = vmul.f32 %v1104, 1.442695
        %v1109 = vpow.pop %v1108
        %v1110 = vmul.f32 %v1105, 1.442695
        %v1111 = vpow.pop %v1110
        %v1112 = vadd.f32 %v1107, 1.0
        %v1113 = vadd.f32 %v1109, 1.0
        %v1114 = vadd.f32 %v1111, 1.0
        %v1115 = vrcp.pop %v1112
        %v1116 = vmul.f32 1.0, %v1115
        %v1117 = vrcp.pop %v1113
        %v1118 = vmul.f32 1.0, %v1117
        %v1119 = vrcp.pop %v1114
        %v1120 = vmul.f32 1.0, %v1119
        %v1121 = vtanh.pop %v1102
        %v1122 = vmul.f32 %v1118, %v849
        %v1123 = vmul.f32 %v1116, %v1121
        %v1124 = vadd.f32 %v1122, %v1123
        %v1125 = vtanh.pop %v1124
        %v1126 = vmul.f32 %v1120, %v1125
        %v1127 = vpack.c.bf16 %v1126, %v1126
        %s1128 = smul.u32 2, 4
        %s1129 = smul.addr %s1128, 8
        %s1130 = scalar_lea.vmem [#allocation2], %s1129
        %v1131 = vld [vmem:[%s1130] sm:$0xff]
        %v1132 = vld [vmem:[%s1130 + $0x8] sm:$0xff]
        %v1133 = vld [vmem:[%s1130 + $0x10] sm:$0xff]
        %v1134 = vld [vmem:[%s1130 + $0x18] sm:$0xff]
        %1135 = vmatprep.subr.bf16.mxu0 %v954
        %1136 = vmatpush1.bf16.msra.mxu0 %v953
        %1137 = vmatprep.subr.bf16.mxu0 %v958
        %1138 = vmatpush1.bf16.msra.mxu0 %v957
        %1139 = vmatprep.subr.bf16.mxu0 %v962
        %1140 = vmatpush1.bf16.msra.mxu0 %v961
        %1141 = vmatprep.subr.bf16.mxu0 %v966
        %1142 = vmatpush1.bf16.msra.mxu0 %v965
        %1143 = vmatprep.subr.bf16.mxu0 %v970
        %1144 = vmatpush1.bf16.msra.mxu0 %v969
        %1145 = vmatprep.subr.bf16.mxu0 %v974
        %1146 = vmatpush1.bf16.msra.mxu0 %v973
        %1147 = vmatprep.subr.bf16.mxu0 %v978
        %1148 = vmatpush1.bf16.msra.mxu0 %v977
        %1149 = vmatprep.subr.bf16.mxu0 %v982
        %1150 = vmatpush1.bf16.msra.mxu0 %v981
        %1151 = vmatprep.subr.bf16.mxu0 0
        %1152 = vmatpush1.bf16.msra.mxu0 0
        %1153 = vmatprep.subr.bf16.mxu0 0
        %1154 = vmatpush1.bf16.msra.mxu0 0
        %1155 = vmatprep.subr.bf16.mxu0 0
        %1156 = vmatpush1.bf16.msra.mxu0 0
        %1157 = vmatprep.subr.bf16.mxu0 0
        %1158 = vmatpush1.bf16.msra.mxu0 0
        %1159 = vmatprep.subr.bf16.mxu0 0
        %1160 = vmatpush1.bf16.msra.mxu0 0
        %1161 = vmatprep.subr.bf16.mxu0 0
        %1162 = vmatpush1.bf16.msra.mxu0 0
        %1163 = vmatprep.subr.bf16.mxu0 0
        %1164 = vmatpush1.bf16.msra.mxu0 0
        %1165 = vmatprep.subr.bf16.mxu0 0
        %1166 = vmatpush1.bf16.msra.mxu0 0
        %1167 = vmatprep.mubr.bf16.mxu0 0
        %1168 = vmatmul.mubr.bf16.gmra.mrb[0].mxu0 %v1127
        %v1169 = vpop.f32.mrb[0].mxu0
        %v1170 = vadd.f32 0.0, %v1169
        %v1171 = vpop.f32.mrb[0].mxu0
        %v1172 = vadd.f32 0.0, %v1171
        %v1173 = vpop.f32.mrb[0].mxu0
        %v1174 = vpop.f32.mrb[0].mxu0
        %1175 = vdwg.mxu0
        %1176 = vmatprep.subr.bf16.mxu0 %v956
        %1177 = vmatpush1.bf16.msra.mxu0 %v955
        %1178 = vmatprep.subr.bf16.mxu0 %v960
        %1179 = vmatpush1.bf16.msra.mxu0 %v959
        %1180 = vmatprep.subr.bf16.mxu0 %v964
        %1181 = vmatpush1.bf16.msra.mxu0 %v963
        %1182 = vmatprep.subr.bf16.mxu0 %v968
        %1183 = vmatpush1.bf16.msra.mxu0 %v967
        %1184 = vmatprep.subr.bf16.mxu0 %v972
        %1185 = vmatpush1.bf16.msra.mxu0 %v971
        %1186 = vmatprep.subr.bf16.mxu0 %v976
        %1187 = vmatpush1.bf16.msra.mxu0 %v975
        %1188 = vmatprep.subr.bf16.mxu0 %v980
        %1189 = vmatpush1.bf16.msra.mxu0 %v979
        %1190 = vmatprep.subr.bf16.mxu0 %v984
        %1191 = vmatpush1.bf16.msra.mxu0 %v983
        %1192 = vmatprep.subr.bf16.mxu0 0
        %1193 = vmatpush1.bf16.msra.mxu0 0
        %1194 = vmatprep.subr.bf16.mxu0 0
        %1195 = vmatpush1.bf16.msra.mxu0 0
        %1196 = vmatprep.subr.bf16.mxu0 0
        %1197 = vmatpush1.bf16.msra.mxu0 0
        %1198 = vmatprep.subr.bf16.mxu0 0
        %1199 = vmatpush1.bf16.msra.mxu0 0
        %1200 = vmatprep.subr.bf16.mxu0 0
        %1201 = vmatpush1.bf16.msra.mxu0 0
        %1202 = vmatprep.subr.bf16.mxu0 0
        %1203 = vmatpush1.bf16.msra.mxu0 0
        %1204 = vmatprep.subr.bf16.mxu0 0
        %1205 = vmatpush1.bf16.msra.mxu0 0
        %1206 = vmatprep.subr.bf16.mxu0 0
        %1207 = vmatpush1.bf16.msra.mxu0 0
        %1208 = vmatprep.mubr.bf16.mxu0 0
        %1209 = vmatmul.mubr.bf16.gmra.mrb[0].mxu0 %v1127
        %v1210 = vpop.f32.mrb[0].mxu0
        %v1211 = vadd.f32 0.0, %v1210
        %v1212 = vpop.f32.mrb[0].mxu0
        %v1213 = vadd.f32 0.0, %v1212
        %v1214 = vpop.f32.mrb[0].mxu0
        %v1215 = vpop.f32.mrb[0].mxu0
        %1216 = vdwg.mxu0
        %v1217 = vadd.f32 %v1131, %v1170
        %v1218 = vadd.f32 %v1132, %v1172
        %v1219 = vadd.f32 %v1133, %v1211
        %v1220 = vadd.f32 %v1134, %v1213
        %v1221 = vxor.u32 %v1217, 2147483648
        %v1222 = vxor.u32 %v1218, 2147483648
        %v1223 = vxor.u32 %v1219, 2147483648
        %v1224 = vmul.f32 %v1221, 1.442695
        %v1225 = vpow.pop %v1224
        %v1226 = vmul.f32 %v1222, 1.442695
        %v1227 = vpow.pop %v1226
        %v1228 = vmul.f32 %v1223, 1.442695
        %v1229 = vpow.pop %v1228
        %v1230 = vadd.f32 %v1225, 1.0
        %v1231 = vadd.f32 %v1227, 1.0
        %v1232 = vadd.f32 %v1229, 1.0
        %v1233 = vrcp.pop %v1230
        %v1234 = vmul.f32 1.0, %v1233
        %v1235 = vrcp.pop %v1231
        %v1236 = vmul.f32 1.0, %v1235
        %v1237 = vrcp.pop %v1232
        %v1238 = vmul.f32 1.0, %v1237
        %v1239 = vtanh.pop %v1220
        %v1240 = vmul.f32 %v1236, %v1124
        %v1241 = vmul.f32 %v1234, %v1239
        %v1242 = vadd.f32 %v1240, %v1241
        %v1243 = vtanh.pop %v1242
        %v1244 = vmul.f32 %v1238, %v1243
        %v1245 = vpack.c.bf16 %v1244, %v1244
        %s1246 = smul.u32 3, 4
        %s1247 = smul.addr %s1246, 8
        %s1248 = scalar_lea.vmem [#allocation2], %s1247
        %v1249 = vld [vmem:[%s1248] sm:$0xff]
        %v1250 = vld [vmem:[%s1248 + $0x8] sm:$0xff]
        %v1251 = vld [vmem:[%s1248 + $0x10] sm:$0xff]
        %v1252 = vld [vmem:[%s1248 + $0x18] sm:$0xff]
        %1253 = vmatprep.subr.bf16.mxu0 %v954
        %1254 = vmatpush1.bf16.msra.mxu0 %v953
        %1255 = vmatprep.subr.bf16.mxu0 %v958
        %1256 = vmatpush1.bf16.msra.mxu0 %v957
        %1257 = vmatprep.subr.bf16.mxu0 %v962
        %1258 = vmatpush1.bf16.msra.mxu0 %v961
        %1259 = vmatprep.subr.bf16.mxu0 %v966
        %1260 = vmatpush1.bf16.msra.mxu0 %v965
        %1261 = vmatprep.subr.bf16.mxu0 %v970
        %1262 = vmatpush1.bf16.msra.mxu0 %v969
        %1263 = vmatprep.subr.bf16.mxu0 %v974
        %1264 = vmatpush1.bf16.msra.mxu0 %v973
        %1265 = vmatprep.subr.bf16.mxu0 %v978
        %1266 = vmatpush1.bf16.msra.mxu0 %v977
        %1267 = vmatprep.subr.bf16.mxu0 %v982
        %1268 = vmatpush1.bf16.msra.mxu0 %v981
        %1269 = vmatprep.subr.bf16.mxu0 0
        %1270 = vmatpush1.bf16.msra.mxu0 0
        %1271 = vmatprep.subr.bf16.mxu0 0
        %1272 = vmatpush1.bf16.msra.mxu0 0
        %1273 = vmatprep.subr.bf16.mxu0 0
        %1274 = vmatpush1.bf16.msra.mxu0 0
        %1275 = vmatprep.subr.bf16.mxu0 0
        %1276 = vmatpush1.bf16.msra.mxu0 0
        %1277 = vmatprep.subr.bf16.mxu0 0
        %1278 = vmatpush1.bf16.msra.mxu0 0
        %1279 = vmatprep.subr.bf16.mxu0 0
        %1280 = vmatpush1.bf16.msra.mxu0 0
        %1281 = vmatprep.subr.bf16.mxu0 0
        %1282 = vmatpush1.bf16.msra.mxu0 0
        %1283 = vmatprep.subr.bf16.mxu0 0
        %1284 = vmatpush1.bf16.msra.mxu0 0
        %1285 = vmatprep.mubr.bf16.mxu0 0
        %1286 = vmatmul.mubr.bf16.gmra.mrb[0].mxu0 %v1245
        %v1287 = vpop.f32.mrb[0].mxu0
        %v1288 = vadd.f32 0.0, %v1287
        %v1289 = vpop.f32.mrb[0].mxu0
        %v1290 = vadd.f32 0.0, %v1289
        %v1291 = vpop.f32.mrb[0].mxu0
        %v1292 = vpop.f32.mrb[0].mxu0
        %1293 = vdwg.mxu0
        %1294 = vmatprep.subr.bf16.mxu0 %v956
        %1295 = vmatpush1.bf16.msra.mxu0 %v955
        %1296 = vmatprep.subr.bf16.mxu0 %v960
        %1297 = vmatpush1.bf16.msra.mxu0 %v959
        %1298 = vmatprep.subr.bf16.mxu0 %v964
        %1299 = vmatpush1.bf16.msra.mxu0 %v963
        %1300 = vmatprep.subr.bf16.mxu0 %v968
        %1301 = vmatpush1.bf16.msra.mxu0 %v967
        %1302 = vmatprep.subr.bf16.mxu0 %v972
        %1303 = vmatpush1.bf16.msra.mxu0 %v971
        %1304 = vmatprep.subr.bf16.mxu0 %v976
        %1305 = vmatpush1.bf16.msra.mxu0 %v975
        %1306 = vmatprep.subr.bf16.mxu0 %v980
        %1307 = vmatpush1.bf16.msra.mxu0 %v979
        %1308 = vmatprep.subr.bf16.mxu0 %v984
        %1309 = vmatpush1.bf16.msra.mxu0 %v983
        %1310 = vmatprep.subr.bf16.mxu0 0
        %1311 = vmatpush1.bf16.msra.mxu0 0
        %1312 = vmatprep.subr.bf16.mxu0 0
        %1313 = vmatpush1.bf16.msra.mxu0 0
        %1314 = vmatprep.subr.bf16.mxu0 0
        %1315 = vmatpush1.bf16.msra.mxu0 0
        %1316 = vmatprep.subr.bf16.mxu0 0
        %1317 = vmatpush1.bf16.msra.mxu0 0
        %1318 = vmatprep.subr.bf16.mxu0 0
        %1319 = vmatpush1.bf16.msra.mxu0 0
        %1320 = vmatprep.subr.bf16.mxu0 0
        %1321 = vmatpush1.bf16.msra.mxu0 0
        %1322 = vmatprep.subr.bf16.mxu0 0
        %1323 = vmatpush1.bf16.msra.mxu0 0
        %1324 = vmatprep.subr.bf16.mxu0 0
        %1325 = vmatpush1.bf16.msra.mxu0 0
        %1326 = vmatprep.mubr.bf16.mxu0 0
        %1327 = vmatmul.mubr.bf16.gmra.mrb[0].mxu0 %v1245
        %v1328 = vpop.f32.mrb[0].mxu0
        %v1329 = vadd.f32 0.0, %v1328
        %v1330 = vpop.f32.mrb[0].mxu0
        %v1331 = vadd.f32 0.0, %v1330
        %v1332 = vpop.f32.mrb[0].mxu0
        %v1333 = vpop.f32.mrb[0].mxu0
        %1334 = vdwg.mxu0
        %v1335 = vadd.f32 %v1249, %v1288
        %v1336 = vadd.f32 %v1250, %v1290
        %v1337 = vadd.f32 %v1251, %v1329
        %v1338 = vadd.f32 %v1252, %v1331
        %v1339 = vxor.u32 %v1335, 2147483648
        %v1340 = vxor.u32 %v1336, 2147483648
        %v1341 = vxor.u32 %v1337, 2147483648
        %v1342 = vmul.f32 %v1339, 1.442695
        %v1343 = vpow.pop %v1342
        %v1344 = vmul.f32 %v1340, 1.442695
        %v1345 = vpow.pop %v1344
        %v1346 = vmul.f32 %v1341, 1.442695
        %v1347 = vpow.pop %v1346
        %v1348 = vadd.f32 %v1343, 1.0
        %v1349 = vadd.f32 %v1345, 1.0
        %v1350 = vadd.f32 %v1347, 1.0
        %v1351 = vrcp.pop %v1348
        %v1352 = vmul.f32 1.0, %v1351
        %v1353 = vrcp.pop %v1349
        %v1354 = vmul.f32 1.0, %v1353
        %v1355 = vrcp.pop %v1350
        %v1356 = vmul.f32 1.0, %v1355
        %v1357 = vtanh.pop %v1338
        %v1358 = vmul.f32 %v1354, %v1242
        %v1359 = vmul.f32 %v1352, %v1357
        %v1360 = vadd.f32 %v1358, %v1359
        %v1361 = vtanh.pop %v1360
        %v1362 = vmul.f32 %v1356, %v1361
        %v1363 = vpack.c.bf16 %v1362, %v1362
        %1364 = vst [vmem:[#allocation3] sm:$0xf] %v1363
        %1365 = vst [vmem:[#allocation4] sm:$0xff] %v1360
        %p1366 = scmp.eq.s32.totalorder %s27, 1
        // Predicated region
        $region61: #{tpu_custom_call.1} parent=43 // pred_check
          %p1367 = pneg %p1366
        $region62: #{tpu_custom_call.1} parent=43 // pred_check_branch
          %1369 = sbr.rel (%p1367) target = $region64
        $region63: #{tpu_custom_call.1} parent=43 // pred_region
          %v1370 = vld [vmem:[%s4] sm:$0xf]
          %v1371 = vld [vmem:[%s4 + $0x4] sm:$0xf]
          %v1372 = vld [vmem:[%s4 + $0x8] sm:$0xf]
          %v1373 = vld [vmem:[%s4 + $0xc] sm:$0xf]
          %v1374 = vld [vmem:[%s4 + $0x10] sm:$0xf]
          %v1375 = vld [vmem:[%s4 + $0x14] sm:$0xf]
          %v1376 = vld [vmem:[%s4 + $0x18] sm:$0xf]
          %v1377 = vld [vmem:[%s4 + $0x1c] sm:$0xf]
          %v1378 = vld [vmem:[%s4 + $0x20] sm:$0xf]
          %v1379 = vld [vmem:[%s4 + $0x24] sm:$0xf]
          %v1380 = vld [vmem:[%s4 + $0x28] sm:$0xf]
          %v1381 = vld [vmem:[%s4 + $0x2c] sm:$0xf]
          %v1382 = vld [vmem:[%s4 + $0x30] sm:$0xf]
          %v1383 = vld [vmem:[%s4 + $0x34] sm:$0xf]
          %v1384 = vld [vmem:[%s4 + $0x38] sm:$0xf]
          %v1385 = vld [vmem:[%s4 + $0x3c] sm:$0xf]
          %v1386 = vld [vmem:[%s5] sm:$0x1]
          %v1388 = vlaneseq
          %v1389 = vshrl.u32 %v1388, 7
          %v1390 = vsub.s32 0, %v1389
          %v1391 = vrot.slane %v1386, %v1390
          %v1409 = vunpack.c.l.b16 %v1370
          %v1410 = vunpack.c.l.b16 %v1371
          %v1411 = vunpack.c.l.b16 %v1372
          %v1412 = vunpack.c.l.b16 %v1373
          %v1413 = vunpack.c.l.b16 %v1374
          %v1414 = vunpack.c.l.b16 %v1375
          %v1415 = vunpack.c.l.b16 %v1376
          %v1416 = vunpack.c.l.b16 %v1377
          %v1417 = vunpack.c.l.b16 %v1378
          %v1418 = vunpack.c.l.b16 %v1379
          %v1419 = vunpack.c.l.b16 %v1380
          %v1420 = vunpack.c.l.b16 %v1381
          %v1421 = vunpack.c.l.b16 %v1382
          %v1422 = vunpack.c.l.b16 %v1383
          %v1423 = vunpack.c.l.b16 %v1384
          %v1424 = vunpack.c.l.b16 %v1385
          %v1425 = vpack.c.b16 %v1410, %v1409
          %v1426 = vpack.c.b16 %v1412, %v1411
          %v1427 = vpack.c.b16 %v1414, %v1413
          %v1428 = vpack.c.b16 %v1416, %v1415
          %v1429 = vpack.c.b16 %v1418, %v1417
          %v1430 = vpack.c.b16 %v1420, %v1419
          %v1431 = vpack.c.b16 %v1422, %v1421
          %v1432 = vpack.c.b16 %v1424, %v1423
          %1441 = vmatprep.subr.bf16.mxu0 0
          %1442 = vmatpush1.bf16.msra.mxu0 %v1425
          %1443 = vmatprep.subr.bf16.mxu0 0
          %1444 = vmatpush1.bf16.msra.mxu0 %v1426
          %1445 = vmatprep.subr.bf16.mxu0 0
          %1446 = vmatpush1.bf16.msra.mxu0 %v1427
          %1447 = vmatprep.subr.bf16.mxu0 0
          %1448 = vmatpush1.bf16.msra.mxu0 %v1428
          %1449 = vmatprep.subr.bf16.mxu0 0
          %1450 = vmatpush1.bf16.msra.mxu0 %v1429
          %1451 = vmatprep.subr.bf16.mxu0 0
          %1452 = vmatpush1.bf16.msra.mxu0 %v1430
          %1453 = vmatprep.subr.bf16.mxu0 0
          %1454 = vmatpush1.bf16.msra.mxu0 %v1431
          %1455 = vmatprep.subr.bf16.mxu0 0
          %1456 = vmatpush1.bf16.msra.mxu0 %v1432
          %1457 = vmatprep.subr.bf16.mxu0 0
          %1458 = vmatpush1.bf16.msra.mxu0 0
          %1459 = vmatprep.subr.bf16.mxu0 0
          %1460 = vmatpush1.bf16.msra.mxu0 0
          %1461 = vmatprep.subr.bf16.mxu0 0
          %1462 = vmatpush1.bf16.msra.mxu0 0
          %1463 = vmatprep.subr.bf16.mxu0 0
          %1464 = vmatpush1.bf16.msra.mxu0 0
          %1465 = vmatprep.subr.bf16.mxu0 0
          %1466 = vmatpush1.bf16.msra.mxu0 0
          %1467 = vmatprep.subr.bf16.mxu0 0
          %1468 = vmatpush1.bf16.msra.mxu0 0
          %1469 = vmatprep.subr.bf16.mxu0 0
          %1470 = vmatpush1.bf16.msra.mxu0 0
          %1471 = vmatprep.subr.bf16.mxu0 0
          %1472 = vmatpush1.bf16.msra.mxu0 0
          %1473 = vmatprep.mubr.bf16.mxu0 0
          %1474 = vmatmul.mubr.bf16.gmra.mrb[0].mxu0 %v1363
          %v1475 = vpop.f32.mrb[0].mxu0
          %v1476 = vadd.f32 %v1391, %v1475
          %v1477 = vpop.f32.mrb[0].mxu0
          %v1478 = vpop.f32.mrb[0].mxu0
          %v1479 = vpop.f32.mrb[0].mxu0
          %1480 = vdwg.mxu0
          %1481 = vst [vmem:[%s297] sm:$0xff] %v1476
        $region64: #{tpu_custom_call.1} parent=43 // pred_fallthru
          _
        %s1482 = sand.u32 %s177, 1
        %s1483 = scalar_lea.sflag [#allocation7], %s1482
        %s1484 = sand.u32 %s177, 1
        %s1485 = smul.addr %s1484, 8
        %s1486 = scalar_lea.vmem [#allocation10], %s1485
        // Predicated region
        $region65: #{tpu_custom_call.1} parent=43 // pred_check
          %p1487 = pneg %p187
        $region66: #{tpu_custom_call.1} parent=43 // pred_check_branch
          %1489 = sbr.rel (%p1487) target = $region68
        $region67: #{tpu_custom_call.1} parent=43 // pred_region
          %s1491 = ssub.s32 128, 128
          %1492 = vsyncadd %s1483, %s1491
          %s1493 = smul.addr %s26, 128
          %s1494 = scalar_lea.hbm %s6, %s1493
          %s1496 = sshll.u32 %s1486, 4
          %s1497 = int_to_ptr.vmem [resolvable:$true] %s1496
          %1499 = dma.vmem_to_hbm [thread:$0]  %s1497, 128, %s1494, %s1483
        $region68: #{tpu_custom_call.1} parent=43 // pred_fallthru
          _
      $region44: #{tpu_custom_call.1} parent=5 // pred_fallthru
        _
      %p1500 = scmp.le.s32.totalorder 2, %s17
      // Predicated region
      $region69: #{tpu_custom_call.1} parent=5 // pred_check
        %p1501 = pneg %p1500
      $region70: #{tpu_custom_call.1} parent=5 // pred_check_branch
        %1503 = sbr.rel (%p1501) target = $region72
      $region71: #{tpu_custom_call.1} parent=5 // pred_region
        %s1504 = ssub.s32 %s17, 2
        // Predicated region
        $region73: #{tpu_custom_call.1} parent=71 // pred_check
          %p1505 = pneg %p193
        $region74: #{tpu_custom_call.1} parent=71 // pred_check_branch
          %1507 = sbr.rel (%p1505) target = $region76
        $region75: #{tpu_custom_call.1} parent=71 // pred_region
          %s1508 = sand.u32 %s178, 1
          %s1509 = scalar_lea.sflag [#allocation7], %s1508
          %s1510 = sand.u32 %s178, 1
          %s1511 = smul.addr %s1510, 8
          %s1512 = scalar_lea.vmem [#allocation10], %s1511
          %1513 = dma.done %s1509, 128
        $region76: #{tpu_custom_call.1} parent=71 // pred_fallthru
          _
      $region72: #{tpu_custom_call.1} parent=5 // pred_fallthru
        _
    $region6: #{tpu_custom_call.1} parent=1 // loop_footer
      %s21 = sadd.s32 1, %s17
    $region7: #{tpu_custom_call.1} parent=1 // loop_footer_branch
      %16 = sbr.rel target = $region3
    $region8: #{tpu_custom_call.1} parent=1 // loop_exit
      _
    %1514 = vsyncpa [#allocation6], 1
    %s1515 = scalar_lea.sflag [#allocation6], 1
    %1516 = vsyncpa %s1515, 1
    %1517 = vsyncpa [#allocation9], 1
    %1518 = vsyncpa [#allocation7], 1
    %s1519 = scalar_lea.sflag [#allocation7], 1
    %1520 = vsyncpa %s1519, 1

</llo_original>
